<compile_context>
chip_gen: v5e
topology: v5e:2x2
jax: 0.10.0
libtpu: 0.0.40
codegen_flags: <defaults>
</compile_context>

<pallas_src>
import jax
import jax.numpy as jnp
from jax.experimental import pallas as pl
from jax.experimental.pallas import tpu as pltpu

GATE_PAD = 128  # lane-padded width of one interleaved gate pair [g_fwd | g_bwd | 0...]


# ----------------------------------------------------------------------------- kernel
def bigru_kernel(ids_ref, emb_ref, w_f_ref, w_b_ref, b_in_ref,
                 whh_ref, b_hn_ref, h0_ref, out_ref):
    T, GP = out_ref.shape            # GP = 128 (lane-padded gate-pair width)
    H = emb_ref.shape[-1]            # full hidden size (fwd+bwd)
    Hh = H // 2                      # per-direction hidden size

    # ---- prologue: in-kernel embedding gather + fused input projection ------------
    # Token ids live in SMEM; the table is (vocab, 1, H) so the gather is a dynamic
    # index on the leading (untiled) dim.
    rows = [emb_ref[ids_ref[t]] for t in range(T)]                  # each (1, H)
    e_fwd = jnp.concatenate(rows, axis=0)                           # (T, H): emb[t]
    e_bwd = jnp.concatenate(rows[::-1], axis=0)                     # (T, H): emb[T-1-t]

    # Row i of gi holds all gate pre-activations needed by fused iteration i
    # (fwd gates for t=i, bwd gates for t=T-1-i), with the r/z hidden biases folded
    # into b_in. Kept as a register value (no VMEM scratch).
    gi = (jnp.dot(e_fwd, w_f_ref[...], preferred_element_type=jnp.float32)
          + jnp.dot(e_bwd, w_b_ref[...], preferred_element_type=jnp.float32)
          + b_in_ref[...])                                          # (T, 3*GP)

    whh = whh_ref[...]               # (GP, 3*GP) block weights over [h_f | h_b | 0..]
    b_hn = b_hn_ref[...]             # (1, GP): n-gate hidden bias (stays inside r*(.))

    # ---- fused fwd/bwd recurrence, fully unrolled (T is static and small) ----------
    # One merged (1,GP)x(GP,3*GP) MXU push per timestep; all gate slices are at
    # vreg boundaries (0/GP/2*GP); padded lanes stay exactly zero.
    h = h0_ref[...]                  # (1, GP) = [h_f | h_b | zero padding]
    hs = []
    for i in range(T):
        xg = gi[i:i + 1, :]
        gh = jnp.dot(h, whh, preferred_element_type=jnp.float32)    # (1, 3*GP)
        r = jax.nn.sigmoid(xg[:, :GP] + gh[:, :GP])
        z = jax.nn.sigmoid(xg[:, GP:2 * GP] + gh[:, GP:2 * GP])
        n = jnp.tanh(xg[:, 2 * GP:] + r * (gh[:, 2 * GP:] + b_hn))
        h = (1.0 - z) * n + z * h
        hs.append(h)

    # ---- epilogue: time-align the bwd half, single lane-dense store ----------------
    # Output row t needs the fwd state from iteration t (lanes [0,Hh)) and the bwd
    # state from iteration T-1-t (lanes [Hh,2*Hh)); padded lanes are zero either way.
    lane = jax.lax.broadcasted_iota(jnp.int32, (1, GP), 1)
    out_ref[...] = jnp.concatenate(
        [jnp.where(lane < Hh, hs[t], hs[T - 1 - t]) for t in range(T)], axis=0)


# ------------------------------------------------------------------ host-side packing
def pack_params(params):
    """One-time layout plumbing (call ONCE, outside the per-call hot path).

    Builds lane-aligned, gate-interleaved weights: each gate pair [g_fwd | g_bwd]
    is padded to a 128-lane block, gate order r, z, n.  b_hh for r/z is folded into
    the prologue bias; only the n-gate b_hh remains per step (PyTorch GRU semantics).
    """
    f32 = jnp.float32
    emb = params["embedding"].astype(f32)
    vocab, H = emb.shape
    Hh = H // 2
    GP = GATE_PAD

    wih_f, wih_b = params["wih_f"], params["wih_b"]     # (H, 3*Hh)
    whh_f, whh_b = params["whh_f"], params["whh_b"]     # (Hh, 3*Hh)
    bih_f, bih_b = params["bih_f"], params["bih_b"]     # (1, 3*Hh)
    bhh_f, bhh_b = params["bhh_f"], params["bhh_b"]     # (1, 3*Hh)

    def gate(w, g):                                     # g-th gate columns (r=0,z=1,n=2)
        return w[:, g * Hh:(g + 1) * Hh]

    # Input projections (one per direction): gate g of the fwd direction occupies
    # lanes [g*GP, g*GP+Hh); of the bwd direction lanes [g*GP+Hh, g*GP+2*Hh).
    w_f = jnp.zeros((H, 3 * GP), f32)
    w_b = jnp.zeros((H, 3 * GP), f32)
    for g in range(3):
        w_f = w_f.at[:, g * GP:g * GP + Hh].set(gate(wih_f, g))
        w_b = w_b.at[:, g * GP + Hh:g * GP + 2 * Hh].set(gate(wih_b, g))

    # Hidden projection over the packed state [h_f | h_b | 0..] (GP lanes).
    whh = jnp.zeros((GP, 3 * GP), f32)
    for g in range(3):
        whh = whh.at[:Hh, g * GP:g * GP + Hh].set(gate(whh_f, g))
        whh = whh.at[Hh:2 * Hh, g * GP + Hh:g * GP + 2 * Hh].set(gate(whh_b, g))

    # Prologue bias: b_ih for all gates, plus b_hh folded in for r/z.
    b_in = jnp.zeros((1, 3 * GP), f32)
    for g in range(3):
        bf = gate(bih_f, g) + (gate(bhh_f, g) if g < 2 else 0.0)
        bb = gate(bih_b, g) + (gate(bhh_b, g) if g < 2 else 0.0)
        b_in = b_in.at[:, g * GP:g * GP + Hh].set(bf)
        b_in = b_in.at[:, g * GP + Hh:g * GP + 2 * Hh].set(bb)

    # Per-step hidden bias: n gate only.
    b_hn = jnp.zeros((1, GP), f32)
    b_hn = b_hn.at[:, :Hh].set(gate(bhh_f, 2))
    b_hn = b_hn.at[:, Hh:2 * Hh].set(gate(bhh_b, 2))

    return {
        "embedding": emb.reshape(vocab, 1, H),   # leading-dim layout for in-kernel gather
        "w_f": w_f, "w_b": w_b, "b_in": b_in,
        "whh": whh, "b_hn": b_hn,
    }


# ------------------------------------------------------------------------ entry point
@jax.jit
def bigru_encoder(word_inputs, hidden, packed):
    """Mirrors BiGRU_Encoder.forward(word_inputs, hidden).

    word_inputs: (T,) int32 token ids
    hidden     : (2, 1, H//2) float32 initial hidden (row 0 = fwd, row 1 = bwd)
    packed     : output of pack_params() (precomputed once)
    returns (output (T, 1, H), hidden (2, 1, H//2))
    """
    emb = packed["embedding"]                       # (vocab, 1, H)
    H = emb.shape[-1]
    Hh = H // 2
    T = word_inputs.shape[0]
    GP = GATE_PAD

    # Packed initial state [h_f | h_b | 0-pad] in one 128-lane row.
    h0 = jnp.zeros((1, GP), jnp.float32).at[:, :H].set(
        hidden.astype(jnp.float32).reshape(1, H))

    out = pl.pallas_call(
        bigru_kernel,
        out_shape=jax.ShapeDtypeStruct((T, GP), jnp.float32),
        in_specs=[pl.BlockSpec(memory_space=pltpu.MemorySpace.SMEM)]       # token ids
                 + [pl.BlockSpec(memory_space=pltpu.MemorySpace.VMEM)] * 7,
        out_specs=pl.BlockSpec(memory_space=pltpu.MemorySpace.VMEM),
    )(word_inputs.astype(jnp.int32), emb, packed["w_f"], packed["w_b"],
      packed["b_in"], packed["whh"], packed["b_hn"], h0)

    output = out[:, :H].reshape(T, 1, H)
    # Final hidden: fwd chain ends at t=T-1 (lanes [0,Hh)); bwd chain ends at t=0.
    hid = jnp.stack([out[T - 1, :Hh], out[0, Hh:H]], axis=0).reshape(2, 1, Hh)
    return output, hid


# ---------------------------------------------------------------- params + reference
def init_params(key, vocab_size, hidden_size):
    Hh = hidden_size // 2
    keys = jax.random.split(key, 9)
    bound = 1.0 / jnp.sqrt(jnp.float32(Hh))

    def u(k, shape):
        return jax.random.uniform(k, shape, jnp.float32, -bound, bound)

    return {
        # nn.Embedding(vocab_size, hidden_size): N(0, 1)
        "embedding": jax.random.normal(keys[0], (vocab_size, hidden_size), jnp.float32),
        # forward direction (stored transposed: x @ W), gate order r, z, n
        "wih_f": u(keys[1], (hidden_size, 3 * Hh)),
        "whh_f": u(keys[2], (Hh, 3 * Hh)),
        "bih_f": u(keys[3], (1, 3 * Hh)),
        "bhh_f": u(keys[4], (1, 3 * Hh)),
        # backward direction
        "wih_b": u(keys[5], (hidden_size, 3 * Hh)),
        "whh_b": u(keys[6], (Hh, 3 * Hh)),
        "bih_b": u(keys[7], (1, 3 * Hh)),
        "bhh_b": u(keys[8], (1, 3 * Hh)),
    }


def bigru_reference(word_inputs, hidden, params):
    """Pure-JAX reference with PyTorch nn.GRU(bidirectional=True) semantics."""
    emb = jnp.take(params["embedding"], word_inputs, axis=0).astype(jnp.float32)
    T, H = emb.shape
    Hh = H // 2

    def cell(x, h, wih, whh, bih, bhh):
        gi = x @ wih + bih
        gh = h @ whh + bhh
        r = jax.nn.sigmoid(gi[:, :Hh] + gh[:, :Hh])
        z = jax.nn.sigmoid(gi[:, Hh:2 * Hh] + gh[:, Hh:2 * Hh])
        n = jnp.tanh(gi[:, 2 * Hh:] + r * gh[:, 2 * Hh:])
        return (1.0 - z) * n + z * h

    h_f = hidden[0].reshape(1, Hh).astype(jnp.float32)
    h_b = hidden[1].reshape(1, Hh).astype(jnp.float32)
    outs_f, outs_b = [], [None] * T
    for t in range(T):
        h_f = cell(emb[t:t + 1], h_f, params["wih_f"], params["whh_f"],
                   params["bih_f"], params["bhh_f"])
        outs_f.append(h_f)
    for t in range(T - 1, -1, -1):
        h_b = cell(emb[t:t + 1], h_b, params["wih_b"], params["whh_b"],
                   params["bih_b"], params["bhh_b"])
        outs_b[t] = h_b
    out = jnp.concatenate([jnp.concatenate(outs_f, axis=0),
                           jnp.concatenate(outs_b, axis=0)], axis=1)
    hid = jnp.concatenate([h_f, h_b], axis=0)
    return out.reshape(T, 1, H), hid.reshape(2, 1, Hh)


if __name__ == "__main__":
    vocab_size = 50
    hidden_size = 32
    seq_len = 8

    root = jax.random.PRNGKey(0)
    k_params, k_tokens, k_hidden = jax.random.split(root, 3)

    params = init_params(k_params, vocab_size, hidden_size)
    packed = pack_params(params)          # one-time layout plumbing, NOT per call

    word_inputs = jax.random.randint(k_tokens, (seq_len,), 0, vocab_size, dtype=jnp.int32)
    # initHidden() is zeros; use a small random hidden to also exercise the h0 path.
    hidden0 = 0.1 * jax.random.normal(k_hidden, (2, 1, hidden_size // 2), jnp.float32)

    output, hidden = bigru_encoder(word_inputs, hidden0, packed)
    jax.block_until_ready((output, hidden))

    assert output.shape == (seq_len, 1, hidden_size)
    assert hidden.shape == (2, 1, hidden_size // 2)

    # Numerical check against the pure-JAX reference (all kernel math stays in f32).
    ref_out, ref_hid = bigru_reference(word_inputs, hidden0, params)
    assert bool(jnp.allclose(output, ref_out, atol=1e-4, rtol=1e-4))
    assert bool(jnp.allclose(hidden, ref_hid, atol=1e-4, rtol=1e-4))

    print("KERNEL_OK")
</pallas_src>

<mosaic_0001>
module attributes {stable_mosaic.version = 11 : i64} {
  func.func @bigru_kernel(%arg0: memref<8xi32, #tpu.memory_space<smem>>, %arg1: memref<50x1x32xf32, #tpu.memory_space<vmem>>, %arg2: memref<32x384xf32, #tpu.memory_space<vmem>>, %arg3: memref<32x384xf32, #tpu.memory_space<vmem>>, %arg4: memref<1x384xf32, #tpu.memory_space<vmem>>, %arg5: memref<128x384xf32, #tpu.memory_space<vmem>>, %arg6: memref<1x128xf32, #tpu.memory_space<vmem>>, %arg7: memref<1x128xf32, #tpu.memory_space<vmem>>, %arg8: memref<8x128xf32, #tpu.memory_space<vmem>>) attributes {dimension_semantics = [], scalar_prefetch = 0 : i64, scratch_operands = 0 : i64, tpu.core_type = #tpu.core_type<tc>} {
    %c0 = arith.constant 0 : index
    %0 = memref.load %arg0[%c0] : memref<8xi32, #tpu.memory_space<smem>>
    %1 = arith.index_cast %0 : i32 to index
    %c0_0 = arith.constant 0 : index
    %c0_1 = arith.constant 0 : index
    %2 = vector.load %arg1[%1, %c0_0, %c0_1] : memref<50x1x32xf32, #tpu.memory_space<vmem>>, vector<1x1x32xf32>
    %3 = vector.shape_cast %2 : vector<1x1x32xf32> to vector<1x32xf32>
    %c1 = arith.constant 1 : index
    %4 = memref.load %arg0[%c1] : memref<8xi32, #tpu.memory_space<smem>>
    %5 = arith.index_cast %4 : i32 to index
    %c0_2 = arith.constant 0 : index
    %c0_3 = arith.constant 0 : index
    %6 = vector.load %arg1[%5, %c0_2, %c0_3] : memref<50x1x32xf32, #tpu.memory_space<vmem>>, vector<1x1x32xf32>
    %7 = vector.shape_cast %6 : vector<1x1x32xf32> to vector<1x32xf32>
    %c2 = arith.constant 2 : index
    %8 = memref.load %arg0[%c2] : memref<8xi32, #tpu.memory_space<smem>>
    %9 = arith.index_cast %8 : i32 to index
    %c0_4 = arith.constant 0 : index
    %c0_5 = arith.constant 0 : index
    %10 = vector.load %arg1[%9, %c0_4, %c0_5] : memref<50x1x32xf32, #tpu.memory_space<vmem>>, vector<1x1x32xf32>
    %11 = vector.shape_cast %10 : vector<1x1x32xf32> to vector<1x32xf32>
    %c3 = arith.constant 3 : index
    %12 = memref.load %arg0[%c3] : memref<8xi32, #tpu.memory_space<smem>>
    %13 = arith.index_cast %12 : i32 to index
    %c0_6 = arith.constant 0 : index
    %c0_7 = arith.constant 0 : index
    %14 = vector.load %arg1[%13, %c0_6, %c0_7] : memref<50x1x32xf32, #tpu.memory_space<vmem>>, vector<1x1x32xf32>
    %15 = vector.shape_cast %14 : vector<1x1x32xf32> to vector<1x32xf32>
    %c4 = arith.constant 4 : index
    %16 = memref.load %arg0[%c4] : memref<8xi32, #tpu.memory_space<smem>>
    %17 = arith.index_cast %16 : i32 to index
    %c0_8 = arith.constant 0 : index
    %c0_9 = arith.constant 0 : index
    %18 = vector.load %arg1[%17, %c0_8, %c0_9] : memref<50x1x32xf32, #tpu.memory_space<vmem>>, vector<1x1x32xf32>
    %19 = vector.shape_cast %18 : vector<1x1x32xf32> to vector<1x32xf32>
    %c5 = arith.constant 5 : index
    %20 = memref.load %arg0[%c5] : memref<8xi32, #tpu.memory_space<smem>>
    %21 = arith.index_cast %20 : i32 to index
    %c0_10 = arith.constant 0 : index
    %c0_11 = arith.constant 0 : index
    %22 = vector.load %arg1[%21, %c0_10, %c0_11] : memref<50x1x32xf32, #tpu.memory_space<vmem>>, vector<1x1x32xf32>
    %23 = vector.shape_cast %22 : vector<1x1x32xf32> to vector<1x32xf32>
    %c6 = arith.constant 6 : index
    %24 = memref.load %arg0[%c6] : memref<8xi32, #tpu.memory_space<smem>>
    %25 = arith.index_cast %24 : i32 to index
    %c0_12 = arith.constant 0 : index
    %c0_13 = arith.constant 0 : index
    %26 = vector.load %arg1[%25, %c0_12, %c0_13] : memref<50x1x32xf32, #tpu.memory_space<vmem>>, vector<1x1x32xf32>
    %27 = vector.shape_cast %26 : vector<1x1x32xf32> to vector<1x32xf32>
    %c7 = arith.constant 7 : index
    %28 = memref.load %arg0[%c7] : memref<8xi32, #tpu.memory_space<smem>>
    %29 = arith.index_cast %28 : i32 to index
    %c0_14 = arith.constant 0 : index
    %c0_15 = arith.constant 0 : index
    %30 = vector.load %arg1[%29, %c0_14, %c0_15] : memref<50x1x32xf32, #tpu.memory_space<vmem>>, vector<1x1x32xf32>
    %31 = vector.shape_cast %30 : vector<1x1x32xf32> to vector<1x32xf32>
    %32 = tpu.concatenate %3, %7, %11, %15, %19, %23, %27, %31 in 0 : vector<1x32xf32>, vector<1x32xf32>, vector<1x32xf32>, vector<1x32xf32>, vector<1x32xf32>, vector<1x32xf32>, vector<1x32xf32>, vector<1x32xf32> -> vector<8x32xf32>
    %33 = tpu.concatenate %31, %27, %23, %19, %15, %11, %7, %3 in 0 : vector<1x32xf32>, vector<1x32xf32>, vector<1x32xf32>, vector<1x32xf32>, vector<1x32xf32>, vector<1x32xf32>, vector<1x32xf32>, vector<1x32xf32> -> vector<8x32xf32>
    %c0_16 = arith.constant 0 : index
    %c0_17 = arith.constant 0 : index
    %34 = vector.load %arg2[%c0_16, %c0_17] : memref<32x384xf32, #tpu.memory_space<vmem>>, vector<32x384xf32>
    %cst = arith.constant dense<0.000000e+00> : vector<8x384xf32>
    %35 = tpu.matmul %32, %34, %cst {dimension_numbers = #tpu.dot_dimension_numbers<[1], [0], [0], [1], [0, 0, 1, 1], [], []>} : vector<8x32xf32>, vector<32x384xf32>, vector<8x384xf32> -> vector<8x384xf32>
    %c0_18 = arith.constant 0 : index
    %c0_19 = arith.constant 0 : index
    %36 = vector.load %arg3[%c0_18, %c0_19] : memref<32x384xf32, #tpu.memory_space<vmem>>, vector<32x384xf32>
    %cst_20 = arith.constant dense<0.000000e+00> : vector<8x384xf32>
    %37 = tpu.matmul %33, %36, %cst_20 {dimension_numbers = #tpu.dot_dimension_numbers<[1], [0], [0], [1], [0, 0, 1, 1], [], []>} : vector<8x32xf32>, vector<32x384xf32>, vector<8x384xf32> -> vector<8x384xf32>
    %38 = arith.addf %35, %37 : vector<8x384xf32>
    %c0_21 = arith.constant 0 : index
    %c0_22 = arith.constant 0 : index
    %39 = vector.load %arg4[%c0_21, %c0_22] : memref<1x384xf32, #tpu.memory_space<vmem>>, vector<1x384xf32>
    %40 = vector.broadcast %39 : vector<1x384xf32> to vector<8x384xf32>
    %41 = arith.addf %38, %40 : vector<8x384xf32>
    %c0_23 = arith.constant 0 : index
    %c0_24 = arith.constant 0 : index
    %42 = vector.load %arg5[%c0_23, %c0_24] : memref<128x384xf32, #tpu.memory_space<vmem>>, vector<128x384xf32>
    %c0_25 = arith.constant 0 : index
    %c0_26 = arith.constant 0 : index
    %43 = vector.load %arg6[%c0_25, %c0_26] : memref<1x128xf32, #tpu.memory_space<vmem>>, vector<1x128xf32>
    %c0_27 = arith.constant 0 : index
    %c0_28 = arith.constant 0 : index
    %44 = vector.load %arg7[%c0_27, %c0_28] : memref<1x128xf32, #tpu.memory_space<vmem>>, vector<1x128xf32>
    %45 = vector.extract_strided_slice %41 {offsets = [0, 0], sizes = [1, 384], strides = [1, 1]} : vector<8x384xf32> to vector<1x384xf32>
    %cst_29 = arith.constant dense<0.000000e+00> : vector<1x384xf32>
    %46 = tpu.matmul %44, %42, %cst_29 {dimension_numbers = #tpu.dot_dimension_numbers<[1], [0], [0], [1], [0, 0, 1, 1], [], []>} : vector<1x128xf32>, vector<128x384xf32>, vector<1x384xf32> -> vector<1x384xf32>
    %47 = vector.extract_strided_slice %45 {offsets = [0, 0], sizes = [1, 128], strides = [1, 1]} : vector<1x384xf32> to vector<1x128xf32>
    %48 = vector.extract_strided_slice %46 {offsets = [0, 0], sizes = [1, 128], strides = [1, 1]} : vector<1x384xf32> to vector<1x128xf32>
    %49 = arith.addf %47, %48 : vector<1x128xf32>
    %50 = arith.negf %49 : vector<1x128xf32>
    %51 = math.exp %50 : vector<1x128xf32>
    %cst_30 = arith.constant 1.000000e+00 : f32
    %52 = vector.broadcast %cst_30 : f32 to vector<1x128xf32>
    %53 = arith.addf %52, %51 : vector<1x128xf32>
    %54 = arith.divf %52, %53 : vector<1x128xf32>
    %55 = vector.extract_strided_slice %45 {offsets = [0, 128], sizes = [1, 128], strides = [1, 1]} : vector<1x384xf32> to vector<1x128xf32>
    %56 = vector.extract_strided_slice %46 {offsets = [0, 128], sizes = [1, 128], strides = [1, 1]} : vector<1x384xf32> to vector<1x128xf32>
    %57 = arith.addf %55, %56 : vector<1x128xf32>
    %58 = arith.negf %57 : vector<1x128xf32>
    %59 = math.exp %58 : vector<1x128xf32>
    %cst_31 = arith.constant 1.000000e+00 : f32
    %60 = vector.broadcast %cst_31 : f32 to vector<1x128xf32>
    %61 = arith.addf %60, %59 : vector<1x128xf32>
    %62 = arith.divf %60, %61 : vector<1x128xf32>
    %63 = vector.extract_strided_slice %45 {offsets = [0, 256], sizes = [1, 128], strides = [1, 1]} : vector<1x384xf32> to vector<1x128xf32>
    %64 = vector.extract_strided_slice %46 {offsets = [0, 256], sizes = [1, 128], strides = [1, 1]} : vector<1x384xf32> to vector<1x128xf32>
    %65 = arith.addf %64, %43 : vector<1x128xf32>
    %66 = arith.mulf %54, %65 : vector<1x128xf32>
    %67 = arith.addf %63, %66 : vector<1x128xf32>
    %68 = math.tanh %67 : vector<1x128xf32>
    %cst_32 = arith.constant 1.000000e+00 : f32
    %69 = vector.broadcast %cst_32 : f32 to vector<1x128xf32>
    %70 = arith.subf %69, %62 : vector<1x128xf32>
    %71 = arith.mulf %70, %68 : vector<1x128xf32>
    %72 = arith.mulf %62, %44 : vector<1x128xf32>
    %73 = arith.addf %71, %72 : vector<1x128xf32>
    %74 = vector.extract_strided_slice %41 {offsets = [1, 0], sizes = [1, 384], strides = [1, 1]} : vector<8x384xf32> to vector<1x384xf32>
    %cst_33 = arith.constant dense<0.000000e+00> : vector<1x384xf32>
    %75 = tpu.matmul %73, %42, %cst_33 {dimension_numbers = #tpu.dot_dimension_numbers<[1], [0], [0], [1], [0, 0, 1, 1], [], []>} : vector<1x128xf32>, vector<128x384xf32>, vector<1x384xf32> -> vector<1x384xf32>
    %76 = vector.extract_strided_slice %74 {offsets = [0, 0], sizes = [1, 128], strides = [1, 1]} : vector<1x384xf32> to vector<1x128xf32>
    %77 = vector.extract_strided_slice %75 {offsets = [0, 0], sizes = [1, 128], strides = [1, 1]} : vector<1x384xf32> to vector<1x128xf32>
    %78 = arith.addf %76, %77 : vector<1x128xf32>
    %79 = arith.negf %78 : vector<1x128xf32>
    %80 = math.exp %79 : vector<1x128xf32>
    %cst_34 = arith.constant 1.000000e+00 : f32
    %81 = vector.broadcast %cst_34 : f32 to vector<1x128xf32>
    %82 = arith.addf %81, %80 : vector<1x128xf32>
    %83 = arith.divf %81, %82 : vector<1x128xf32>
    %84 = vector.extract_strided_slice %74 {offsets = [0, 128], sizes = [1, 128], strides = [1, 1]} : vector<1x384xf32> to vector<1x128xf32>
    %85 = vector.extract_strided_slice %75 {offsets = [0, 128], sizes = [1, 128], strides = [1, 1]} : vector<1x384xf32> to vector<1x128xf32>
    %86 = arith.addf %84, %85 : vector<1x128xf32>
    %87 = arith.negf %86 : vector<1x128xf32>
    %88 = math.exp %87 : vector<1x128xf32>
    %cst_35 = arith.constant 1.000000e+00 : f32
    %89 = vector.broadcast %cst_35 : f32 to vector<1x128xf32>
    %90 = arith.addf %89, %88 : vector<1x128xf32>
    %91 = arith.divf %89, %90 : vector<1x128xf32>
    %92 = vector.extract_strided_slice %74 {offsets = [0, 256], sizes = [1, 128], strides = [1, 1]} : vector<1x384xf32> to vector<1x128xf32>
    %93 = vector.extract_strided_slice %75 {offsets = [0, 256], sizes = [1, 128], strides = [1, 1]} : vector<1x384xf32> to vector<1x128xf32>
    %94 = arith.addf %93, %43 : vector<1x128xf32>
    %95 = arith.mulf %83, %94 : vector<1x128xf32>
    %96 = arith.addf %92, %95 : vector<1x128xf32>
    %97 = math.tanh %96 : vector<1x128xf32>
    %cst_36 = arith.constant 1.000000e+00 : f32
    %98 = vector.broadcast %cst_36 : f32 to vector<1x128xf32>
    %99 = arith.subf %98, %91 : vector<1x128xf32>
    %100 = arith.mulf %99, %97 : vector<1x128xf32>
    %101 = arith.mulf %91, %73 : vector<1x128xf32>
    %102 = arith.addf %100, %101 : vector<1x128xf32>
    %103 = vector.extract_strided_slice %41 {offsets = [2, 0], sizes = [1, 384], strides = [1, 1]} : vector<8x384xf32> to vector<1x384xf32>
    %cst_37 = arith.constant dense<0.000000e+00> : vector<1x384xf32>
    %104 = tpu.matmul %102, %42, %cst_37 {dimension_numbers = #tpu.dot_dimension_numbers<[1], [0], [0], [1], [0, 0, 1, 1], [], []>} : vector<1x128xf32>, vector<128x384xf32>, vector<1x384xf32> -> vector<1x384xf32>
    %105 = vector.extract_strided_slice %103 {offsets = [0, 0], sizes = [1, 128], strides = [1, 1]} : vector<1x384xf32> to vector<1x128xf32>
    %106 = vector.extract_strided_slice %104 {offsets = [0, 0], sizes = [1, 128], strides = [1, 1]} : vector<1x384xf32> to vector<1x128xf32>
    %107 = arith.addf %105, %106 : vector<1x128xf32>
    %108 = arith.negf %107 : vector<1x128xf32>
    %109 = math.exp %108 : vector<1x128xf32>
    %cst_38 = arith.constant 1.000000e+00 : f32
    %110 = vector.broadcast %cst_38 : f32 to vector<1x128xf32>
    %111 = arith.addf %110, %109 : vector<1x128xf32>
    %112 = arith.divf %110, %111 : vector<1x128xf32>
    %113 = vector.extract_strided_slice %103 {offsets = [0, 128], sizes = [1, 128], strides = [1, 1]} : vector<1x384xf32> to vector<1x128xf32>
    %114 = vector.extract_strided_slice %104 {offsets = [0, 128], sizes = [1, 128], strides = [1, 1]} : vector<1x384xf32> to vector<1x128xf32>
    %115 = arith.addf %113, %114 : vector<1x128xf32>
    %116 = arith.negf %115 : vector<1x128xf32>
    %117 = math.exp %116 : vector<1x128xf32>
    %cst_39 = arith.constant 1.000000e+00 : f32
    %118 = vector.broadcast %cst_39 : f32 to vector<1x128xf32>
    %119 = arith.addf %118, %117 : vector<1x128xf32>
    %120 = arith.divf %118, %119 : vector<1x128xf32>
    %121 = vector.extract_strided_slice %103 {offsets = [0, 256], sizes = [1, 128], strides = [1, 1]} : vector<1x384xf32> to vector<1x128xf32>
    %122 = vector.extract_strided_slice %104 {offsets = [0, 256], sizes = [1, 128], strides = [1, 1]} : vector<1x384xf32> to vector<1x128xf32>
    %123 = arith.addf %122, %43 : vector<1x128xf32>
    %124 = arith.mulf %112, %123 : vector<1x128xf32>
    %125 = arith.addf %121, %124 : vector<1x128xf32>
    %126 = math.tanh %125 : vector<1x128xf32>
    %cst_40 = arith.constant 1.000000e+00 : f32
    %127 = vector.broadcast %cst_40 : f32 to vector<1x128xf32>
    %128 = arith.subf %127, %120 : vector<1x128xf32>
    %129 = arith.mulf %128, %126 : vector<1x128xf32>
    %130 = arith.mulf %120, %102 : vector<1x128xf32>
    %131 = arith.addf %129, %130 : vector<1x128xf32>
    %132 = vector.extract_strided_slice %41 {offsets = [3, 0], sizes = [1, 384], strides = [1, 1]} : vector<8x384xf32> to vector<1x384xf32>
    %cst_41 = arith.constant dense<0.000000e+00> : vector<1x384xf32>
    %133 = tpu.matmul %131, %42, %cst_41 {dimension_numbers = #tpu.dot_dimension_numbers<[1], [0], [0], [1], [0, 0, 1, 1], [], []>} : vector<1x128xf32>, vector<128x384xf32>, vector<1x384xf32> -> vector<1x384xf32>
    %134 = vector.extract_strided_slice %132 {offsets = [0, 0], sizes = [1, 128], strides = [1, 1]} : vector<1x384xf32> to vector<1x128xf32>
    %135 = vector.extract_strided_slice %133 {offsets = [0, 0], sizes = [1, 128], strides = [1, 1]} : vector<1x384xf32> to vector<1x128xf32>
    %136 = arith.addf %134, %135 : vector<1x128xf32>
    %137 = arith.negf %136 : vector<1x128xf32>
    %138 = math.exp %137 : vector<1x128xf32>
    %cst_42 = arith.constant 1.000000e+00 : f32
    %139 = vector.broadcast %cst_42 : f32 to vector<1x128xf32>
    %140 = arith.addf %139, %138 : vector<1x128xf32>
    %141 = arith.divf %139, %140 : vector<1x128xf32>
    %142 = vector.extract_strided_slice %132 {offsets = [0, 128], sizes = [1, 128], strides = [1, 1]} : vector<1x384xf32> to vector<1x128xf32>
    %143 = vector.extract_strided_slice %133 {offsets = [0, 128], sizes = [1, 128], strides = [1, 1]} : vector<1x384xf32> to vector<1x128xf32>
    %144 = arith.addf %142, %143 : vector<1x128xf32>
    %145 = arith.negf %144 : vector<1x128xf32>
    %146 = math.exp %145 : vector<1x128xf32>
    %cst_43 = arith.constant 1.000000e+00 : f32
    %147 = vector.broadcast %cst_43 : f32 to vector<1x128xf32>
    %148 = arith.addf %147, %146 : vector<1x128xf32>
    %149 = arith.divf %147, %148 : vector<1x128xf32>
    %150 = vector.extract_strided_slice %132 {offsets = [0, 256], sizes = [1, 128], strides = [1, 1]} : vector<1x384xf32> to vector<1x128xf32>
    %151 = vector.extract_strided_slice %133 {offsets = [0, 256], sizes = [1, 128], strides = [1, 1]} : vector<1x384xf32> to vector<1x128xf32>
    %152 = arith.addf %151, %43 : vector<1x128xf32>
    %153 = arith.mulf %141, %152 : vector<1x128xf32>
    %154 = arith.addf %150, %153 : vector<1x128xf32>
    %155 = math.tanh %154 : vector<1x128xf32>
    %cst_44 = arith.constant 1.000000e+00 : f32
    %156 = vector.broadcast %cst_44 : f32 to vector<1x128xf32>
    %157 = arith.subf %156, %149 : vector<1x128xf32>
    %158 = arith.mulf %157, %155 : vector<1x128xf32>
    %159 = arith.mulf %149, %131 : vector<1x128xf32>
    %160 = arith.addf %158, %159 : vector<1x128xf32>
    %161 = vector.extract_strided_slice %41 {offsets = [4, 0], sizes = [1, 384], strides = [1, 1]} : vector<8x384xf32> to vector<1x384xf32>
    %cst_45 = arith.constant dense<0.000000e+00> : vector<1x384xf32>
    %162 = tpu.matmul %160, %42, %cst_45 {dimension_numbers = #tpu.dot_dimension_numbers<[1], [0], [0], [1], [0, 0, 1, 1], [], []>} : vector<1x128xf32>, vector<128x384xf32>, vector<1x384xf32> -> vector<1x384xf32>
    %163 = vector.extract_strided_slice %161 {offsets = [0, 0], sizes = [1, 128], strides = [1, 1]} : vector<1x384xf32> to vector<1x128xf32>
    %164 = vector.extract_strided_slice %162 {offsets = [0, 0], sizes = [1, 128], strides = [1, 1]} : vector<1x384xf32> to vector<1x128xf32>
    %165 = arith.addf %163, %164 : vector<1x128xf32>
    %166 = arith.negf %165 : vector<1x128xf32>
    %167 = math.exp %166 : vector<1x128xf32>
    %cst_46 = arith.constant 1.000000e+00 : f32
    %168 = vector.broadcast %cst_46 : f32 to vector<1x128xf32>
    %169 = arith.addf %168, %167 : vector<1x128xf32>
    %170 = arith.divf %168, %169 : vector<1x128xf32>
    %171 = vector.extract_strided_slice %161 {offsets = [0, 128], sizes = [1, 128], strides = [1, 1]} : vector<1x384xf32> to vector<1x128xf32>
    %172 = vector.extract_strided_slice %162 {offsets = [0, 128], sizes = [1, 128], strides = [1, 1]} : vector<1x384xf32> to vector<1x128xf32>
    %173 = arith.addf %171, %172 : vector<1x128xf32>
    %174 = arith.negf %173 : vector<1x128xf32>
    %175 = math.exp %174 : vector<1x128xf32>
    %cst_47 = arith.constant 1.000000e+00 : f32
    %176 = vector.broadcast %cst_47 : f32 to vector<1x128xf32>
    %177 = arith.addf %176, %175 : vector<1x128xf32>
    %178 = arith.divf %176, %177 : vector<1x128xf32>
    %179 = vector.extract_strided_slice %161 {offsets = [0, 256], sizes = [1, 128], strides = [1, 1]} : vector<1x384xf32> to vector<1x128xf32>
    %180 = vector.extract_strided_slice %162 {offsets = [0, 256], sizes = [1, 128], strides = [1, 1]} : vector<1x384xf32> to vector<1x128xf32>
    %181 = arith.addf %180, %43 : vector<1x128xf32>
    %182 = arith.mulf %170, %181 : vector<1x128xf32>
    %183 = arith.addf %179, %182 : vector<1x128xf32>
    %184 = math.tanh %183 : vector<1x128xf32>
    %cst_48 = arith.constant 1.000000e+00 : f32
    %185 = vector.broadcast %cst_48 : f32 to vector<1x128xf32>
    %186 = arith.subf %185, %178 : vector<1x128xf32>
    %187 = arith.mulf %186, %184 : vector<1x128xf32>
    %188 = arith.mulf %178, %160 : vector<1x128xf32>
    %189 = arith.addf %187, %188 : vector<1x128xf32>
    %190 = vector.extract_strided_slice %41 {offsets = [5, 0], sizes = [1, 384], strides = [1, 1]} : vector<8x384xf32> to vector<1x384xf32>
    %cst_49 = arith.constant dense<0.000000e+00> : vector<1x384xf32>
    %191 = tpu.matmul %189, %42, %cst_49 {dimension_numbers = #tpu.dot_dimension_numbers<[1], [0], [0], [1], [0, 0, 1, 1], [], []>} : vector<1x128xf32>, vector<128x384xf32>, vector<1x384xf32> -> vector<1x384xf32>
    %192 = vector.extract_strided_slice %190 {offsets = [0, 0], sizes = [1, 128], strides = [1, 1]} : vector<1x384xf32> to vector<1x128xf32>
    %193 = vector.extract_strided_slice %191 {offsets = [0, 0], sizes = [1, 128], strides = [1, 1]} : vector<1x384xf32> to vector<1x128xf32>
    %194 = arith.addf %192, %193 : vector<1x128xf32>
    %195 = arith.negf %194 : vector<1x128xf32>
    %196 = math.exp %195 : vector<1x128xf32>
    %cst_50 = arith.constant 1.000000e+00 : f32
    %197 = vector.broadcast %cst_50 : f32 to vector<1x128xf32>
    %198 = arith.addf %197, %196 : vector<1x128xf32>
    %199 = arith.divf %197, %198 : vector<1x128xf32>
    %200 = vector.extract_strided_slice %190 {offsets = [0, 128], sizes = [1, 128], strides = [1, 1]} : vector<1x384xf32> to vector<1x128xf32>
    %201 = vector.extract_strided_slice %191 {offsets = [0, 128], sizes = [1, 128], strides = [1, 1]} : vector<1x384xf32> to vector<1x128xf32>
    %202 = arith.addf %200, %201 : vector<1x128xf32>
    %203 = arith.negf %202 : vector<1x128xf32>
    %204 = math.exp %203 : vector<1x128xf32>
    %cst_51 = arith.constant 1.000000e+00 : f32
    %205 = vector.broadcast %cst_51 : f32 to vector<1x128xf32>
    %206 = arith.addf %205, %204 : vector<1x128xf32>
    %207 = arith.divf %205, %206 : vector<1x128xf32>
    %208 = vector.extract_strided_slice %190 {offsets = [0, 256], sizes = [1, 128], strides = [1, 1]} : vector<1x384xf32> to vector<1x128xf32>
    %209 = vector.extract_strided_slice %191 {offsets = [0, 256], sizes = [1, 128], strides = [1, 1]} : vector<1x384xf32> to vector<1x128xf32>
    %210 = arith.addf %209, %43 : vector<1x128xf32>
    %211 = arith.mulf %199, %210 : vector<1x128xf32>
    %212 = arith.addf %208, %211 : vector<1x128xf32>
    %213 = math.tanh %212 : vector<1x128xf32>
    %cst_52 = arith.constant 1.000000e+00 : f32
    %214 = vector.broadcast %cst_52 : f32 to vector<1x128xf32>
    %215 = arith.subf %214, %207 : vector<1x128xf32>
    %216 = arith.mulf %215, %213 : vector<1x128xf32>
    %217 = arith.mulf %207, %189 : vector<1x128xf32>
    %218 = arith.addf %216, %217 : vector<1x128xf32>
    %219 = vector.extract_strided_slice %41 {offsets = [6, 0], sizes = [1, 384], strides = [1, 1]} : vector<8x384xf32> to vector<1x384xf32>
    %cst_53 = arith.constant dense<0.000000e+00> : vector<1x384xf32>
    %220 = tpu.matmul %218, %42, %cst_53 {dimension_numbers = #tpu.dot_dimension_numbers<[1], [0], [0], [1], [0, 0, 1, 1], [], []>} : vector<1x128xf32>, vector<128x384xf32>, vector<1x384xf32> -> vector<1x384xf32>
    %221 = vector.extract_strided_slice %219 {offsets = [0, 0], sizes = [1, 128], strides = [1, 1]} : vector<1x384xf32> to vector<1x128xf32>
    %222 = vector.extract_strided_slice %220 {offsets = [0, 0], sizes = [1, 128], strides = [1, 1]} : vector<1x384xf32> to vector<1x128xf32>
    %223 = arith.addf %221, %222 : vector<1x128xf32>
    %224 = arith.negf %223 : vector<1x128xf32>
    %225 = math.exp %224 : vector<1x128xf32>
    %cst_54 = arith.constant 1.000000e+00 : f32
    %226 = vector.broadcast %cst_54 : f32 to vector<1x128xf32>
    %227 = arith.addf %226, %225 : vector<1x128xf32>
    %228 = arith.divf %226, %227 : vector<1x128xf32>
    %229 = vector.extract_strided_slice %219 {offsets = [0, 128], sizes = [1, 128], strides = [1, 1]} : vector<1x384xf32> to vector<1x128xf32>
    %230 = vector.extract_strided_slice %220 {offsets = [0, 128], sizes = [1, 128], strides = [1, 1]} : vector<1x384xf32> to vector<1x128xf32>
    %231 = arith.addf %229, %230 : vector<1x128xf32>
    %232 = arith.negf %231 : vector<1x128xf32>
    %233 = math.exp %232 : vector<1x128xf32>
    %cst_55 = arith.constant 1.000000e+00 : f32
    %234 = vector.broadcast %cst_55 : f32 to vector<1x128xf32>
    %235 = arith.addf %234, %233 : vector<1x128xf32>
    %236 = arith.divf %234, %235 : vector<1x128xf32>
    %237 = vector.extract_strided_slice %219 {offsets = [0, 256], sizes = [1, 128], strides = [1, 1]} : vector<1x384xf32> to vector<1x128xf32>
    %238 = vector.extract_strided_slice %220 {offsets = [0, 256], sizes = [1, 128], strides = [1, 1]} : vector<1x384xf32> to vector<1x128xf32>
    %239 = arith.addf %238, %43 : vector<1x128xf32>
    %240 = arith.mulf %228, %239 : vector<1x128xf32>
    %241 = arith.addf %237, %240 : vector<1x128xf32>
    %242 = math.tanh %241 : vector<1x128xf32>
    %cst_56 = arith.constant 1.000000e+00 : f32
    %243 = vector.broadcast %cst_56 : f32 to vector<1x128xf32>
    %244 = arith.subf %243, %236 : vector<1x128xf32>
    %245 = arith.mulf %244, %242 : vector<1x128xf32>
    %246 = arith.mulf %236, %218 : vector<1x128xf32>
    %247 = arith.addf %245, %246 : vector<1x128xf32>
    %248 = vector.extract_strided_slice %41 {offsets = [7, 0], sizes = [1, 384], strides = [1, 1]} : vector<8x384xf32> to vector<1x384xf32>
    %cst_57 = arith.constant dense<0.000000e+00> : vector<1x384xf32>
    %249 = tpu.matmul %247, %42, %cst_57 {dimension_numbers = #tpu.dot_dimension_numbers<[1], [0], [0], [1], [0, 0, 1, 1], [], []>} : vector<1x128xf32>, vector<128x384xf32>, vector<1x384xf32> -> vector<1x384xf32>
    %250 = vector.extract_strided_slice %248 {offsets = [0, 0], sizes = [1, 128], strides = [1, 1]} : vector<1x384xf32> to vector<1x128xf32>
    %251 = vector.extract_strided_slice %249 {offsets = [0, 0], sizes = [1, 128], strides = [1, 1]} : vector<1x384xf32> to vector<1x128xf32>
    %252 = arith.addf %250, %251 : vector<1x128xf32>
    %253 = arith.negf %252 : vector<1x128xf32>
    %254 = math.exp %253 : vector<1x128xf32>
    %cst_58 = arith.constant 1.000000e+00 : f32
    %255 = vector.broadcast %cst_58 : f32 to vector<1x128xf32>
    %256 = arith.addf %255, %254 : vector<1x128xf32>
    %257 = arith.divf %255, %256 : vector<1x128xf32>
    %258 = vector.extract_strided_slice %248 {offsets = [0, 128], sizes = [1, 128], strides = [1, 1]} : vector<1x384xf32> to vector<1x128xf32>
    %259 = vector.extract_strided_slice %249 {offsets = [0, 128], sizes = [1, 128], strides = [1, 1]} : vector<1x384xf32> to vector<1x128xf32>
    %260 = arith.addf %258, %259 : vector<1x128xf32>
    %261 = arith.negf %260 : vector<1x128xf32>
    %262 = math.exp %261 : vector<1x128xf32>
    %cst_59 = arith.constant 1.000000e+00 : f32
    %263 = vector.broadcast %cst_59 : f32 to vector<1x128xf32>
    %264 = arith.addf %263, %262 : vector<1x128xf32>
    %265 = arith.divf %263, %264 : vector<1x128xf32>
    %266 = vector.extract_strided_slice %248 {offsets = [0, 256], sizes = [1, 128], strides = [1, 1]} : vector<1x384xf32> to vector<1x128xf32>
    %267 = vector.extract_strided_slice %249 {offsets = [0, 256], sizes = [1, 128], strides = [1, 1]} : vector<1x384xf32> to vector<1x128xf32>
    %268 = arith.addf %267, %43 : vector<1x128xf32>
    %269 = arith.mulf %257, %268 : vector<1x128xf32>
    %270 = arith.addf %266, %269 : vector<1x128xf32>
    %271 = math.tanh %270 : vector<1x128xf32>
    %cst_60 = arith.constant 1.000000e+00 : f32
    %272 = vector.broadcast %cst_60 : f32 to vector<1x128xf32>
    %273 = arith.subf %272, %265 : vector<1x128xf32>
    %274 = arith.mulf %273, %271 : vector<1x128xf32>
    %275 = arith.mulf %265, %247 : vector<1x128xf32>
    %276 = arith.addf %274, %275 : vector<1x128xf32>
    %277 = tpu.iota {dimensions = array<i32: 1>} : vector<1x128xi32>
    %c16_i32 = arith.constant 16 : i32
    %278 = vector.broadcast %c16_i32 : i32 to vector<1x128xi32>
    %279 = arith.cmpi slt, %277, %278 : vector<1x128xi32>
    %280 = arith.select %279, %73, %276 : vector<1x128xi1>, vector<1x128xf32>
    %c16_i32_61 = arith.constant 16 : i32
    %281 = vector.broadcast %c16_i32_61 : i32 to vector<1x128xi32>
    %282 = arith.cmpi slt, %277, %281 : vector<1x128xi32>
    %283 = arith.select %282, %102, %247 : vector<1x128xi1>, vector<1x128xf32>
    %c16_i32_62 = arith.constant 16 : i32
    %284 = vector.broadcast %c16_i32_62 : i32 to vector<1x128xi32>
    %285 = arith.cmpi slt, %277, %284 : vector<1x128xi32>
    %286 = arith.select %285, %131, %218 : vector<1x128xi1>, vector<1x128xf32>
    %c16_i32_63 = arith.constant 16 : i32
    %287 = vector.broadcast %c16_i32_63 : i32 to vector<1x128xi32>
    %288 = arith.cmpi slt, %277, %287 : vector<1x128xi32>
    %289 = arith.select %288, %160, %189 : vector<1x128xi1>, vector<1x128xf32>
    %c16_i32_64 = arith.constant 16 : i32
    %290 = vector.broadcast %c16_i32_64 : i32 to vector<1x128xi32>
    %291 = arith.cmpi slt, %277, %290 : vector<1x128xi32>
    %292 = arith.select %291, %189, %160 : vector<1x128xi1>, vector<1x128xf32>
    %c16_i32_65 = arith.constant 16 : i32
    %293 = vector.broadcast %c16_i32_65 : i32 to vector<1x128xi32>
    %294 = arith.cmpi slt, %277, %293 : vector<1x128xi32>
    %295 = arith.select %294, %218, %131 : vector<1x128xi1>, vector<1x128xf32>
    %c16_i32_66 = arith.constant 16 : i32
    %296 = vector.broadcast %c16_i32_66 : i32 to vector<1x128xi32>
    %297 = arith.cmpi slt, %277, %296 : vector<1x128xi32>
    %298 = arith.select %297, %247, %102 : vector<1x128xi1>, vector<1x128xf32>
    %c16_i32_67 = arith.constant 16 : i32
    %299 = vector.broadcast %c16_i32_67 : i32 to vector<1x128xi32>
    %300 = arith.cmpi slt, %277, %299 : vector<1x128xi32>
    %301 = arith.select %300, %276, %73 : vector<1x128xi1>, vector<1x128xf32>
    %302 = tpu.concatenate %280, %283, %286, %289, %292, %295, %298, %301 in 0 : vector<1x128xf32>, vector<1x128xf32>, vector<1x128xf32>, vector<1x128xf32>, vector<1x128xf32>, vector<1x128xf32>, vector<1x128xf32>, vector<1x128xf32> -> vector<8x128xf32>
    %c0_68 = arith.constant 0 : index
    %c0_69 = arith.constant 0 : index
    %303 = vector.load %arg8[%c0_68, %c0_69] : memref<8x128xf32, #tpu.memory_space<vmem>>, vector<8x128xf32>
    tpu.vector_store %arg8[%c0_68, %c0_69], %302 {strides = array<i32>} : memref<8x128xf32, #tpu.memory_space<vmem>>, vector<8x128xf32>,
    return
  }
}

</mosaic_0001>

<llo_original>
// kernel: bigru_encoder.1
$region0: #{bigru_encoder.1}
  #allocation0 [shape = 'u32[]', space=smem, size = 0x4, offset = 0x4, fixed_abs, tag = 'smem constant byte address 0x4 - core index']
  #allocation1 [shape = 'u32[72,128]{1,0:T(1,128)}', space=vmem, size = 0x9000, scoped, tag = 'internal scratch']
  %s0 = inlined_call_operand.hbm [shape: s32[8], index: 0, kind: input, shape index: {}]
  %s1 = inlined_call_operand.vmem [shape: f32[50,1,32], index: 1, kind: input, shape index: {}]
  %s2 = inlined_call_operand.vmem [shape: f32[32,384], index: 2, kind: input, shape index: {}]
  %s3 = inlined_call_operand.hbm [shape: f32[32,384], index: 3, kind: input, shape index: {}]
  %s4 = inlined_call_operand.vmem [shape: f32[1,384], index: 4, kind: input, shape index: {}]
  %s5 = inlined_call_operand.hbm [shape: f32[128,384], index: 5, kind: input, shape index: {}]
  %s6 = inlined_call_operand.hbm [shape: f32[1,128], index: 6, kind: input, shape index: {}]
  %s7 = inlined_call_operand.vmem [shape: f32[1,128], index: 7, kind: input, shape index: {}]
  %s8 = inlined_call_operand.vmem [shape: f32[8,128], index: 8, kind: output, shape index: {}]
  %s9 = sld [smem:[#allocation0]]
  $region58: #{bigru_encoder.1} parent=0
    _
  %s11 = ssub.s32 1, %s9
  %s12 = scalar_select 0, %s11, %s9
  $region1: #{bigru_encoder.1} parent=0
    #allocation2 [shape = 'u8[512]{0}', space=smem, size = 0x200, scoped, tag = 'input window, operand 0, single buffered']
    #allocation3 [shape = 's32[1]{0}', space=sflag, size = 0x4, scoped, tag = 'scoped memory for bigru_encoder.1']
    #allocation4 [shape = 's32[1]{0}', space=sflag, size = 0x4, scoped, tag = 'scoped memory for bigru_encoder.1']
    #allocation5 [shape = 'u8[49152]{0}', space=vmem, size = 0xc000, scoped, tag = 'input window, operand 3, single buffered']
    #allocation6 [shape = 'u8[196608]{0}', space=vmem, size = 0x30000, scoped, tag = 'input window, operand 5, single buffered']
    #allocation7 [shape = 's32[1]{0}', space=sflag, size = 0x4, scoped, tag = 'scoped memory for bigru_encoder.1']
    #allocation8 [shape = 'u8[512]{0}', space=vmem, size = 0x400, scoped, tag = 'input window, operand 6, single buffered']
    %13 = vsyncpa [#allocation4], 0
    %14 = vsyncpa [#allocation3], 0
    %15 = vsyncpa [#allocation7], 0
    // Predicated region
    $region2: #{bigru_encoder.1} parent=1 // pred_check
      _
    $region3: #{bigru_encoder.1} parent=1 // pred_check_branch
      %17 = sbr.rel (0) target = $region5
    $region4: #{bigru_encoder.1} parent=1 // pred_region
      %19 = vsyncadd [#allocation4], 0
      %s21 = sshll.u32 %s0, 4
      %s22 = int_to_ptr.hbm [resolvable:$true] %s21
      %24 = dma.hbm_to_smem %s22, 16, [#allocation2], [#allocation4]
    $region5: #{bigru_encoder.1} parent=1 // pred_fallthru
      _
    // Predicated region
    $region6: #{bigru_encoder.1} parent=1 // pred_check
      _
    $region7: #{bigru_encoder.1} parent=1 // pred_check_branch
      %26 = sbr.rel (0) target = $region9
    $region8: #{bigru_encoder.1} parent=1 // pred_region
      _
    $region9: #{bigru_encoder.1} parent=1 // pred_fallthru
      _
    // Predicated region
    $region10: #{bigru_encoder.1} parent=1 // pred_check
      _
    $region11: #{bigru_encoder.1} parent=1 // pred_check_branch
      %28 = sbr.rel (0) target = $region13
    $region12: #{bigru_encoder.1} parent=1 // pred_region
      _
    $region13: #{bigru_encoder.1} parent=1 // pred_fallthru
      _
    // Predicated region
    $region14: #{bigru_encoder.1} parent=1 // pred_check
      _
    $region15: #{bigru_encoder.1} parent=1 // pred_check_branch
      %30 = sbr.rel (0) target = $region17
    $region16: #{bigru_encoder.1} parent=1 // pred_region
      %32 = vsyncadd [#allocation3], 0
      %s33 = sshll.u32 %s3, 4
      %s34 = int_to_ptr.hbm [resolvable:$true] %s33
      %s35 = sshll.u32 [#allocation5], 4
      %s36 = int_to_ptr.vmem [resolvable:$true] %s35
      %41 = dma.hbm_to_vmem [thread:$0]  %s34, 1536, %s36, [#allocation3], 384, 384, 24
    $region17: #{bigru_encoder.1} parent=1 // pred_fallthru
      _
    // Predicated region
    $region18: #{bigru_encoder.1} parent=1 // pred_check
      _
    $region19: #{bigru_encoder.1} parent=1 // pred_check_branch
      %43 = sbr.rel (0) target = $region21
    $region20: #{bigru_encoder.1} parent=1 // pred_region
      _
    $region21: #{bigru_encoder.1} parent=1 // pred_fallthru
      _
    // Predicated region
    $region22: #{bigru_encoder.1} parent=1 // pred_check
      _
    $region23: #{bigru_encoder.1} parent=1 // pred_check_branch
      %45 = sbr.rel (0) target = $region25
    $region24: #{bigru_encoder.1} parent=1 // pred_region
      %47 = vsyncadd [#allocation7], 0
      %s48 = sshll.u32 %s5, 4
      %s49 = int_to_ptr.hbm [resolvable:$true] %s48
      %s50 = sshll.u32 [#allocation6], 4
      %s51 = int_to_ptr.vmem [resolvable:$true] %s50
      %56 = dma.hbm_to_vmem [thread:$0]  %s49, 6144, %s51, [#allocation7], 384, 384, 24
    $region25: #{bigru_encoder.1} parent=1 // pred_fallthru
      _
    // Predicated region
    $region26: #{bigru_encoder.1} parent=1 // pred_check
      _
    $region27: #{bigru_encoder.1} parent=1 // pred_check_branch
      %58 = sbr.rel (0) target = $region29
    $region28: #{bigru_encoder.1} parent=1 // pred_region
      %60 = vsyncadd [#allocation7], 0
      %s62 = sshll.u32 %s6, 4
      %s63 = int_to_ptr.hbm [resolvable:$true] %s62
      %s64 = sshll.u32 [#allocation8], 4
      %s65 = int_to_ptr.vmem [resolvable:$true] %s64
      %67 = dma.hbm_to_vmem [thread:$0]  %s63, 16, %s65, [#allocation7]
    $region29: #{bigru_encoder.1} parent=1 // pred_fallthru
      _
    // Predicated region
    $region30: #{bigru_encoder.1} parent=1 // pred_check
      _
    $region31: #{bigru_encoder.1} parent=1 // pred_check_branch
      %69 = sbr.rel (0) target = $region33
    $region32: #{bigru_encoder.1} parent=1 // pred_region
      _
    $region33: #{bigru_encoder.1} parent=1 // pred_fallthru
      _
    // Predicated region
    $region34: #{bigru_encoder.1} parent=1 // pred_check
      _
    $region35: #{bigru_encoder.1} parent=1 // pred_check_branch
      %71 = sbr.rel (0) target = $region37
    $region36: #{bigru_encoder.1} parent=1 // pred_region
      %73 = dma.done [#allocation4], 16
    $region37: #{bigru_encoder.1} parent=1 // pred_fallthru
      _
    // Predicated region
    $region38: #{bigru_encoder.1} parent=1 // pred_check
      _
    $region39: #{bigru_encoder.1} parent=1 // pred_check_branch
      %75 = sbr.rel (0) target = $region41
    $region40: #{bigru_encoder.1} parent=1 // pred_region
      %77 = dma.done [#allocation3], 1536
    $region41: #{bigru_encoder.1} parent=1 // pred_fallthru
      _
    // Predicated region
    $region42: #{bigru_encoder.1} parent=1 // pred_check
      _
    $region43: #{bigru_encoder.1} parent=1 // pred_check_branch
      %79 = sbr.rel (0) target = $region45
    $region44: #{bigru_encoder.1} parent=1 // pred_region
      %81 = dma.done [#allocation7], 6144
    $region45: #{bigru_encoder.1} parent=1 // pred_fallthru
      _
    // Predicated region
    $region46: #{bigru_encoder.1} parent=1 // pred_check
      _
    $region47: #{bigru_encoder.1} parent=1 // pred_check_branch
      %83 = sbr.rel (0) target = $region49
    $region48: #{bigru_encoder.1} parent=1 // pred_region
      %85 = dma.done [#allocation7], 16
    $region49: #{bigru_encoder.1} parent=1 // pred_fallthru
      _
    %86 = sfence
    %s87 = sld [smem:[#allocation2]]
    %s88 = scalar_lea.vmem %s1, %s87
    %v89 = vld [vmem:[%s88] sm:$0x1]
    %s90 = sld [smem:[#allocation2 + $0x1]]
    %s91 = scalar_lea.vmem %s1, %s90
    %v92 = vld [vmem:[%s91] sm:$0x1]
    %s93 = sld [smem:[#allocation2 + $0x2]]
    %s94 = scalar_lea.vmem %s1, %s93
    %v95 = vld [vmem:[%s94] sm:$0x1]
    %s96 = sld [smem:[#allocation2 + $0x3]]
    %s97 = scalar_lea.vmem %s1, %s96
    %v98 = vld [vmem:[%s97] sm:$0x1]
    %s99 = sld [smem:[#allocation2 + $0x4]]
    %s100 = scalar_lea.vmem %s1, %s99
    %v101 = vld [vmem:[%s100] sm:$0x1]
    %s102 = sld [smem:[#allocation2 + $0x5]]
    %s103 = scalar_lea.vmem %s1, %s102
    %v104 = vld [vmem:[%s103] sm:$0x1]
    %s105 = sld [smem:[#allocation2 + $0x6]]
    %s106 = scalar_lea.vmem %s1, %s105
    %v107 = vld [vmem:[%s106] sm:$0x1]
    %s108 = sld [smem:[#allocation2 + $0x7]]
    %s109 = scalar_lea.vmem %s1, %s108
    %v110 = vld [vmem:[%s109] sm:$0x1]
    %v112 = vperm.slane %v92, 0
    %v115 = vperm.slane %v95, 0
    %v118 = vperm.slane %v98, 0
    %v121 = vperm.slane %v101, 0
    %v124 = vperm.slane %v104, 0
    %v127 = vperm.slane %v107, 0
    %v130 = vperm.slane %v110, 0
    %vm132 = vcmask 1040384
    %v133 = vsel %vm132, %v89, %v112
    %vm134 = vcmask 1041408
    %v135 = vsel %vm134, %v133, %v115
    %vm136 = vcmask 1042432
    %v137 = vsel %vm136, %v135, %v118
    %vm138 = vcmask 1043456
    %v139 = vsel %vm138, %v137, %v121
    %vm140 = vcmask 1044480
    %v141 = vsel %vm140, %v139, %v124
    %vm142 = vcmask 1045504
    %v143 = vsel %vm142, %v141, %v127
    %vm144 = vcmask 1046528
    %v145 = vsel %vm144, %v143, %v130
    %v147 = vperm.slane %v89, 0
    %v149 = vsel %vm132, %v110, %v127
    %v150 = vsel %vm134, %v149, %v124
    %v151 = vsel %vm136, %v150, %v121
    %v152 = vsel %vm138, %v151, %v118
    %v153 = vsel %vm140, %v152, %v115
    %v154 = vsel %vm142, %v153, %v112
    %v155 = vsel %vm144, %v154, %v147
    %v156 = vld [vmem:[%s2] sm:$0xff]
    %v157 = vld [vmem:[%s2 + $0x8] sm:$0xff]
    %v158 = vld [vmem:[%s2 + $0x10] sm:$0xff]
    %v159 = vld [vmem:[%s2 + $0x18] sm:$0xff]
    %v160 = vld [vmem:[%s2 + $0x20] sm:$0xff]
    %v161 = vld [vmem:[%s2 + $0x28] sm:$0xff]
    %v162 = vld [vmem:[%s2 + $0x30] sm:$0xff]
    %v163 = vld [vmem:[%s2 + $0x38] sm:$0xff]
    %v164 = vld [vmem:[%s2 + $0x40] sm:$0xff]
    %v165 = vld [vmem:[%s2 + $0x48] sm:$0xff]
    %v166 = vld [vmem:[%s2 + $0x50] sm:$0xff]
    %v167 = vld [vmem:[%s2 + $0x58] sm:$0xff]
    %v168 = vld [vmem:[#allocation5] sm:$0xff]
    %v169 = vld [vmem:[#allocation5 + $0x8] sm:$0xff]
    %v170 = vld [vmem:[#allocation5 + $0x10] sm:$0xff]
    %v171 = vld [vmem:[#allocation5 + $0x18] sm:$0xff]
    %v172 = vld [vmem:[#allocation5 + $0x20] sm:$0xff]
    %v173 = vld [vmem:[#allocation5 + $0x28] sm:$0xff]
    %v174 = vld [vmem:[#allocation5 + $0x30] sm:$0xff]
    %v175 = vld [vmem:[#allocation5 + $0x38] sm:$0xff]
    %v176 = vld [vmem:[#allocation5 + $0x40] sm:$0xff]
    %v177 = vld [vmem:[#allocation5 + $0x48] sm:$0xff]
    %v178 = vld [vmem:[#allocation5 + $0x50] sm:$0xff]
    %v179 = vld [vmem:[#allocation5 + $0x58] sm:$0xff]
    %vm180 = vcmask 261120
    %v182 = vsel %vm180, %v155, 0
    %184 = vmatpush.msra.mxu0 0.0
    %185 = vmatpush.msra.mxu0 0.0
    %186 = vmatpush.msra.mxu0 0.0
    %187 = vmatpush.msra.mxu0 0.0
    %188 = vmatpush.msra.mxu0 0.0
    %189 = vmatpush.msra.mxu0 0.0
    %190 = vmatpush.msra.mxu0 0.0
    %191 = vmatpush.msra.mxu0 0.0
    %192 = vmatpush.msra.mxu0 0.0
    %193 = vmatpush.msra.mxu0 0.0
    %194 = vmatpush.msra.mxu0 0.0
    %195 = vmatpush.msra.mxu0 0.0
    %196 = vmatpush.msra.mxu0 %v177
    %197 = vmatpush.msra.mxu0 %v174
    %198 = vmatpush.msra.mxu0 %v171
    %199 = vmatpush.msra.mxu0 %v168
    %200 = vmatmul.f32.gmra.mxu0 %v182
    %v201 = vpop.f32.mrf.mxu0
    %v202 = vadd.f32 0.0, %v201
    %203 = vdwg.mxu0
    %204 = vmatpush.msra.mxu0 0.0
    %205 = vmatpush.msra.mxu0 0.0
    %206 = vmatpush.msra.mxu0 0.0
    %207 = vmatpush.msra.mxu0 0.0
    %208 = vmatpush.msra.mxu0 0.0
    %209 = vmatpush.msra.mxu0 0.0
    %210 = vmatpush.msra.mxu0 0.0
    %211 = vmatpush.msra.mxu0 0.0
    %212 = vmatpush.msra.mxu0 0.0
    %213 = vmatpush.msra.mxu0 0.0
    %214 = vmatpush.msra.mxu0 0.0
    %215 = vmatpush.msra.mxu0 0.0
    %216 = vmatpush.msra.mxu0 %v178
    %217 = vmatpush.msra.mxu0 %v175
    %218 = vmatpush.msra.mxu0 %v172
    %219 = vmatpush.msra.mxu0 %v169
    %220 = vmatmul.f32.gmra.mxu0 %v182
    %v221 = vpop.f32.mrf.mxu0
    %v222 = vadd.f32 0.0, %v221
    %223 = vdwg.mxu0
    %224 = vmatpush.msra.mxu0 0.0
    %225 = vmatpush.msra.mxu0 0.0
    %226 = vmatpush.msra.mxu0 0.0
    %227 = vmatpush.msra.mxu0 0.0
    %228 = vmatpush.msra.mxu0 0.0
    %229 = vmatpush.msra.mxu0 0.0
    %230 = vmatpush.msra.mxu0 0.0
    %231 = vmatpush.msra.mxu0 0.0
    %232 = vmatpush.msra.mxu0 0.0
    %233 = vmatpush.msra.mxu0 0.0
    %234 = vmatpush.msra.mxu0 0.0
    %235 = vmatpush.msra.mxu0 0.0
    %236 = vmatpush.msra.mxu0 %v179
    %237 = vmatpush.msra.mxu0 %v176
    %238 = vmatpush.msra.mxu0 %v173
    %239 = vmatpush.msra.mxu0 %v170
    %240 = vmatmul.f32.gmra.mxu0 %v182
    %v241 = vpop.f32.mrf.mxu0
    %v242 = vadd.f32 0.0, %v241
    %243 = vdwg.mxu0
    %v245 = vsel %vm180, %v145, 0
    %247 = vmatpush.msra.mxu0 0.0
    %248 = vmatpush.msra.mxu0 0.0
    %249 = vmatpush.msra.mxu0 0.0
    %250 = vmatpush.msra.mxu0 0.0
    %251 = vmatpush.msra.mxu0 0.0
    %252 = vmatpush.msra.mxu0 0.0
    %253 = vmatpush.msra.mxu0 0.0
    %254 = vmatpush.msra.mxu0 0.0
    %255 = vmatpush.msra.mxu0 0.0
    %256 = vmatpush.msra.mxu0 0.0
    %257 = vmatpush.msra.mxu0 0.0
    %258 = vmatpush.msra.mxu0 0.0
    %259 = vmatpush.msra.mxu0 %v165
    %260 = vmatpush.msra.mxu0 %v162
    %261 = vmatpush.msra.mxu0 %v159
    %262 = vmatpush.msra.mxu0 %v156
    %263 = vmatmul.f32.gmra.mxu0 %v245
    %v264 = vpop.f32.mrf.mxu0
    %v265 = vadd.f32 %v202, %v264
    %266 = vdwg.mxu0
    %267 = vmatpush.msra.mxu0 0.0
    %268 = vmatpush.msra.mxu0 0.0
    %269 = vmatpush.msra.mxu0 0.0
    %270 = vmatpush.msra.mxu0 0.0
    %271 = vmatpush.msra.mxu0 0.0
    %272 = vmatpush.msra.mxu0 0.0
    %273 = vmatpush.msra.mxu0 0.0
    %274 = vmatpush.msra.mxu0 0.0
    %275 = vmatpush.msra.mxu0 0.0
    %276 = vmatpush.msra.mxu0 0.0
    %277 = vmatpush.msra.mxu0 0.0
    %278 = vmatpush.msra.mxu0 0.0
    %279 = vmatpush.msra.mxu0 %v166
    %280 = vmatpush.msra.mxu0 %v163
    %281 = vmatpush.msra.mxu0 %v160
    %282 = vmatpush.msra.mxu0 %v157
    %283 = vmatmul.f32.gmra.mxu0 %v245
    %v284 = vpop.f32.mrf.mxu0
    %v285 = vadd.f32 %v222, %v284
    %286 = vdwg.mxu0
    %287 = vmatpush.msra.mxu0 0.0
    %288 = vmatpush.msra.mxu0 0.0
    %289 = vmatpush.msra.mxu0 0.0
    %290 = vmatpush.msra.mxu0 0.0
    %291 = vmatpush.msra.mxu0 0.0
    %292 = vmatpush.msra.mxu0 0.0
    %293 = vmatpush.msra.mxu0 0.0
    %294 = vmatpush.msra.mxu0 0.0
    %295 = vmatpush.msra.mxu0 0.0
    %296 = vmatpush.msra.mxu0 0.0
    %297 = vmatpush.msra.mxu0 0.0
    %298 = vmatpush.msra.mxu0 0.0
    %299 = vmatpush.msra.mxu0 %v167
    %300 = vmatpush.msra.mxu0 %v164
    %301 = vmatpush.msra.mxu0 %v161
    %302 = vmatpush.msra.mxu0 %v158
    %303 = vmatmul.f32.gmra.mxu0 %v245
    %v304 = vpop.f32.mrf.mxu0
    %v305 = vadd.f32 %v242, %v304
    %306 = vdwg.mxu0
    %v307 = vld [vmem:[%s4] sm:$0x7]
    %v309 = vperm.slane %v307, 0
    %v310 = vperm.slane %v307, 1
    %v311 = vperm.slane %v307, 2
    %v315 = vadd.f32 %v265, %v309
    %v316 = vadd.f32 %v285, %v310
    %v317 = vadd.f32 %v305, %v311
    %v318 = vld [vmem:[#allocation6] sm:$0xff]
    %v319 = vld [vmem:[#allocation6 + $0x8] sm:$0xff]
    %v320 = vld [vmem:[#allocation6 + $0x10] sm:$0xff]
    %v321 = vld [vmem:[#allocation6 + $0x18] sm:$0xff]
    %v322 = vld [vmem:[#allocation6 + $0x20] sm:$0xff]
    %v323 = vld [vmem:[#allocation6 + $0x28] sm:$0xff]
    %v324 = vld [vmem:[#allocation6 + $0x30] sm:$0xff]
    %v325 = vld [vmem:[#allocation6 + $0x38] sm:$0xff]
    %v326 = vld [vmem:[#allocation6 + $0x40] sm:$0xff]
    %v327 = vld [vmem:[#allocation6 + $0x48] sm:$0xff]
    %v328 = vld [vmem:[#allocation6 + $0x50] sm:$0xff]
    %v329 = vld [vmem:[#allocation6 + $0x58] sm:$0xff]
    %v330 = vld [vmem:[#allocation6 + $0x60] sm:$0xff]
    %v331 = vld [vmem:[#allocation6 + $0x68] sm:$0xff]
    %v332 = vld [vmem:[#allocation6 + $0x70] sm:$0xff]
    %v333 = vld [vmem:[#allocation6 + $0x78] sm:$0xff]
    %v334 = vld [vmem:[#allocation6 + $0x80] sm:$0xff]
    %v335 = vld [vmem:[#allocation6 + $0x88] sm:$0xff]
    %v336 = vld [vmem:[#allocation6 + $0x90] sm:$0xff]
    %v337 = vld [vmem:[#allocation6 + $0x98] sm:$0xff]
    %v338 = vld [vmem:[#allocation6 + $0xa0] sm:$0xff]
    %v339 = vld [vmem:[#allocation6 + $0xa8] sm:$0xff]
    %v340 = vld [vmem:[#allocation6 + $0xb0] sm:$0xff]
    %v341 = vld [vmem:[#allocation6 + $0xb8] sm:$0xff]
    %v342 = vld [vmem:[#allocation6 + $0xc0] sm:$0xff]
    %v343 = vld [vmem:[#allocation6 + $0xc8] sm:$0xff]
    %v344 = vld [vmem:[#allocation6 + $0xd0] sm:$0xff]
    %v345 = vld [vmem:[#allocation6 + $0xd8] sm:$0xff]
    %v346 = vld [vmem:[#allocation6 + $0xe0] sm:$0xff]
    %v347 = vld [vmem:[#allocation6 + $0xe8] sm:$0xff]
    %v348 = vld [vmem:[#allocation6 + $0xf0] sm:$0xff]
    %v349 = vld [vmem:[#allocation6 + $0xf8] sm:$0xff]
    %v350 = vld [vmem:[#allocation6 + $0x100] sm:$0xff]
    %v351 = vld [vmem:[#allocation6 + $0x108] sm:$0xff]
    %v352 = vld [vmem:[#allocation6 + $0x110] sm:$0xff]
    %v353 = vld [vmem:[#allocation6 + $0x118] sm:$0xff]
    %v354 = vld [vmem:[#allocation6 + $0x120] sm:$0xff]
    %v355 = vld [vmem:[#allocation6 + $0x128] sm:$0xff]
    %v356 = vld [vmem:[#allocation6 + $0x130] sm:$0xff]
    %v357 = vld [vmem:[#allocation6 + $0x138] sm:$0xff]
    %v358 = vld [vmem:[#allocation6 + $0x140] sm:$0xff]
    %v359 = vld [vmem:[#allocation6 + $0x148] sm:$0xff]
    %v360 = vld [vmem:[#allocation6 + $0x150] sm:$0xff]
    %v361 = vld [vmem:[#allocation6 + $0x158] sm:$0xff]
    %v362 = vld [vmem:[#allocation6 + $0x160] sm:$0xff]
    %v363 = vld [vmem:[#allocation6 + $0x168] sm:$0xff]
    %v364 = vld [vmem:[#allocation6 + $0x170] sm:$0xff]
    %v365 = vld [vmem:[#allocation6 + $0x178] sm:$0xff]
    %v366 = vld [vmem:[#allocation8] sm:$0x1]
    %v367 = vld [vmem:[%s7] sm:$0x1]
    %368 = vmatpush.msra.mxu0 %v363
    %369 = vmatpush.msra.mxu0 %v360
    %370 = vmatpush.msra.mxu0 %v357
    %371 = vmatpush.msra.mxu0 %v354
    %372 = vmatpush.msra.mxu0 %v351
    %373 = vmatpush.msra.mxu0 %v348
    %374 = vmatpush.msra.mxu0 %v345
    %375 = vmatpush.msra.mxu0 %v342
    %376 = vmatpush.msra.mxu0 %v339
    %377 = vmatpush.msra.mxu0 %v336
    %378 = vmatpush.msra.mxu0 %v333
    %379 = vmatpush.msra.mxu0 %v330
    %380 = vmatpush.msra.mxu0 %v327
    %381 = vmatpush.msra.mxu0 %v324
    %382 = vmatpush.msra.mxu0 %v321
    %383 = vmatpush.msra.mxu0 %v318
    %384 = vmatmul.f32.gmra.mxu0 %v367
    %v385 = vpop.f32.mrf.mxu0
    %v386 = vadd.f32 0.0, %v385
    %387 = vdwg.mxu0
    %388 = vmatpush.msra.mxu0 %v364
    %389 = vmatpush.msra.mxu0 %v361
    %390 = vmatpush.msra.mxu0 %v358
    %391 = vmatpush.msra.mxu0 %v355
    %392 = vmatpush.msra.mxu0 %v352
    %393 = vmatpush.msra.mxu0 %v349
    %394 = vmatpush.msra.mxu0 %v346
    %395 = vmatpush.msra.mxu0 %v343
    %396 = vmatpush.msra.mxu0 %v340
    %397 = vmatpush.msra.mxu0 %v337
    %398 = vmatpush.msra.mxu0 %v334
    %399 = vmatpush.msra.mxu0 %v331
    %400 = vmatpush.msra.mxu0 %v328
    %401 = vmatpush.msra.mxu0 %v325
    %402 = vmatpush.msra.mxu0 %v322
    %403 = vmatpush.msra.mxu0 %v319
    %404 = vmatmul.f32.gmra.mxu0 %v367
    %v405 = vpop.f32.mrf.mxu0
    %v406 = vadd.f32 0.0, %v405
    %407 = vdwg.mxu0
    %408 = vmatpush.msra.mxu0 %v365
    %409 = vmatpush.msra.mxu0 %v362
    %410 = vmatpush.msra.mxu0 %v359
    %411 = vmatpush.msra.mxu0 %v356
    %412 = vmatpush.msra.mxu0 %v353
    %413 = vmatpush.msra.mxu0 %v350
    %414 = vmatpush.msra.mxu0 %v347
    %415 = vmatpush.msra.mxu0 %v344
    %416 = vmatpush.msra.mxu0 %v341
    %417 = vmatpush.msra.mxu0 %v338
    %418 = vmatpush.msra.mxu0 %v335
    %419 = vmatpush.msra.mxu0 %v332
    %420 = vmatpush.msra.mxu0 %v329
    %421 = vmatpush.msra.mxu0 %v326
    %422 = vmatpush.msra.mxu0 %v323
    %423 = vmatpush.msra.mxu0 %v320
    %424 = vmatmul.f32.gmra.mxu0 %v367
    %v425 = vpop.f32.mrf.mxu0
    %v426 = vadd.f32 0.0, %v425
    %427 = vdwg.mxu0
    %v428 = vadd.f32 %v315, %v386
    %v429 = vxor.u32 %v428, 2147483648
    %v430 = vmul.f32 %v429, 1.442695
    %v431 = vpow.pop %v430
    %v432 = vadd.f32 %v431, 1.0
    %v433 = vrcp.pop %v432
    %v434 = vmul.f32 %v432, %v433
    %v435 = vsub.f32 1.0, %v434
    %v436 = vmul.f32 %v433, %v435
    %v437 = vadd.f32 %v433, %v436
    %vm438 = vweird.f32 %v432
    %vm439 = vweird.f32 %v433
    %vm440 = vmor %vm438, %vm439
    %v441 = vsel %vm440, %v433, %v437
    %v442 = vand.u32 2147483647, %v432
    %vm443 = vcmp.eq.f32.partialorder %v442, 8.507059e+37
    %v444 = vand.u32 %v432, 2147483648
    %v445 = vor.u32 1.1754944e-38, %v444
    %v446 = vsel %vm443, %v445, %v441
    %v447 = vmul.f32 1.0, %v446
    %v448 = vadd.f32 %v316, %v406
    %v449 = vxor.u32 %v448, 2147483648
    %v450 = vmul.f32 %v449, 1.442695
    %v451 = vpow.pop %v450
    %v452 = vadd.f32 %v451, 1.0
    %v453 = vrcp.pop %v452
    %v454 = vmul.f32 %v452, %v453
    %v455 = vsub.f32 1.0, %v454
    %v456 = vmul.f32 %v453, %v455
    %v457 = vadd.f32 %v453, %v456
    %vm458 = vweird.f32 %v452
    %vm459 = vweird.f32 %v453
    %vm460 = vmor %vm458, %vm459
    %v461 = vsel %vm460, %v453, %v457
    %v462 = vand.u32 2147483647, %v452
    %vm463 = vcmp.eq.f32.partialorder %v462, 8.507059e+37
    %v464 = vand.u32 %v452, 2147483648
    %v465 = vor.u32 1.1754944e-38, %v464
    %v466 = vsel %vm463, %v465, %v461
    %v467 = vmul.f32 1.0, %v466
    %v468 = vadd.f32 %v426, %v366
    %v469 = vmul.f32 %v447, %v468
    %v470 = vadd.f32 %v317, %v469
    %v471 = vtanh.pop %v470
    %v472 = vsub.f32 1.0, %v467
    %v473 = vmul.f32 %v472, %v471
    %v474 = vmul.f32 %v467, %v367
    %v475 = vadd.f32 %v473, %v474
    %476 = vmatpush.msra.mxu0 %v363
    %477 = vmatpush.msra.mxu0 %v360
    %478 = vmatpush.msra.mxu0 %v357
    %479 = vmatpush.msra.mxu0 %v354
    %480 = vmatpush.msra.mxu0 %v351
    %481 = vmatpush.msra.mxu0 %v348
    %482 = vmatpush.msra.mxu0 %v345
    %483 = vmatpush.msra.mxu0 %v342
    %484 = vmatpush.msra.mxu0 %v339
    %485 = vmatpush.msra.mxu0 %v336
    %486 = vmatpush.msra.mxu0 %v333
    %487 = vmatpush.msra.mxu0 %v330
    %488 = vmatpush.msra.mxu0 %v327
    %489 = vmatpush.msra.mxu0 %v324
    %490 = vmatpush.msra.mxu0 %v321
    %491 = vmatpush.msra.mxu0 %v318
    %492 = vmatmul.f32.gmra.mxu0 %v475
    %v493 = vpop.f32.mrf.mxu0
    %v494 = vadd.f32 0.0, %v493
    %495 = vdwg.mxu0
    %496 = vmatpush.msra.mxu0 %v364
    %497 = vmatpush.msra.mxu0 %v361
    %498 = vmatpush.msra.mxu0 %v358
    %499 = vmatpush.msra.mxu0 %v355
    %500 = vmatpush.msra.mxu0 %v352
    %501 = vmatpush.msra.mxu0 %v349
    %502 = vmatpush.msra.mxu0 %v346
    %503 = vmatpush.msra.mxu0 %v343
    %504 = vmatpush.msra.mxu0 %v340
    %505 = vmatpush.msra.mxu0 %v337
    %506 = vmatpush.msra.mxu0 %v334
    %507 = vmatpush.msra.mxu0 %v331
    %508 = vmatpush.msra.mxu0 %v328
    %509 = vmatpush.msra.mxu0 %v325
    %510 = vmatpush.msra.mxu0 %v322
    %511 = vmatpush.msra.mxu0 %v319
    %512 = vmatmul.f32.gmra.mxu0 %v475
    %v513 = vpop.f32.mrf.mxu0
    %v514 = vadd.f32 0.0, %v513
    %515 = vdwg.mxu0
    %516 = vmatpush.msra.mxu0 %v365
    %517 = vmatpush.msra.mxu0 %v362
    %518 = vmatpush.msra.mxu0 %v359
    %519 = vmatpush.msra.mxu0 %v356
    %520 = vmatpush.msra.mxu0 %v353
    %521 = vmatpush.msra.mxu0 %v350
    %522 = vmatpush.msra.mxu0 %v347
    %523 = vmatpush.msra.mxu0 %v344
    %524 = vmatpush.msra.mxu0 %v341
    %525 = vmatpush.msra.mxu0 %v338
    %526 = vmatpush.msra.mxu0 %v335
    %527 = vmatpush.msra.mxu0 %v332
    %528 = vmatpush.msra.mxu0 %v329
    %529 = vmatpush.msra.mxu0 %v326
    %530 = vmatpush.msra.mxu0 %v323
    %531 = vmatpush.msra.mxu0 %v320
    %532 = vmatmul.f32.gmra.mxu0 %v475
    %v533 = vpop.f32.mrf.mxu0
    %v534 = vadd.f32 0.0, %v533
    %535 = vdwg.mxu0
    %v537 = vrot.slane %v494, 7
    %v539 = vadd.f32 %v315, %v537
    %v540 = vxor.u32 %v539, 2147483648
    %v541 = vmul.f32 %v540, 1.442695
    %v542 = vpow.pop %v541
    %v543 = vadd.f32 %v542, 1.0
    %v544 = vrcp.pop %v543
    %v545 = vmul.f32 %v543, %v544
    %v546 = vsub.f32 1.0, %v545
    %v547 = vmul.f32 %v544, %v546
    %v548 = vadd.f32 %v544, %v547
    %vm549 = vweird.f32 %v543
    %vm550 = vweird.f32 %v544
    %vm551 = vmor %vm549, %vm550
    %v552 = vsel %vm551, %v544, %v548
    %v553 = vand.u32 2147483647, %v543
    %vm554 = vcmp.eq.f32.partialorder %v553, 8.507059e+37
    %v555 = vand.u32 %v543, 2147483648
    %v556 = vor.u32 1.1754944e-38, %v555
    %v557 = vsel %vm554, %v556, %v552
    %v558 = vmul.f32 1.0, %v557
    %v560 = vrot.slane %v514, 7
    %v562 = vadd.f32 %v316, %v560
    %v563 = vxor.u32 %v562, 2147483648
    %v564 = vmul.f32 %v563, 1.442695
    %v565 = vpow.pop %v564
    %v566 = vadd.f32 %v565, 1.0
    %v567 = vrcp.pop %v566
    %v568 = vmul.f32 %v566, %v567
    %v569 = vsub.f32 1.0, %v568
    %v570 = vmul.f32 %v567, %v569
    %v571 = vadd.f32 %v567, %v570
    %vm572 = vweird.f32 %v566
    %vm573 = vweird.f32 %v567
    %vm574 = vmor %vm572, %vm573
    %v575 = vsel %vm574, %v567, %v571
    %v576 = vand.u32 2147483647, %v566
    %vm577 = vcmp.eq.f32.partialorder %v576, 8.507059e+37
    %v578 = vand.u32 %v566, 2147483648
    %v579 = vor.u32 1.1754944e-38, %v578
    %v580 = vsel %vm577, %v579, %v575
    %v581 = vmul.f32 1.0, %v580
    %v582 = vadd.f32 %v534, %v366
    %v584 = vrot.slane %v582, 7
    %v586 = vmul.f32 %v558, %v584
    %v587 = vadd.f32 %v317, %v586
    %v588 = vtanh.pop %v587
    %v589 = vsub.f32 1.0, %v581
    %v590 = vmul.f32 %v589, %v588
    %v592 = vrot.slane %v475, 7
    %v594 = vmul.f32 %v581, %v592
    %v595 = vadd.f32 %v590, %v594
    %v597 = vrot.slane %v595, 1
    %599 = vmatpush.msra.mxu0 %v363
    %600 = vmatpush.msra.mxu0 %v360
    %601 = vmatpush.msra.mxu0 %v357
    %602 = vmatpush.msra.mxu0 %v354
    %603 = vmatpush.msra.mxu0 %v351
    %604 = vmatpush.msra.mxu0 %v348
    %605 = vmatpush.msra.mxu0 %v345
    %606 = vmatpush.msra.mxu0 %v342
    %607 = vmatpush.msra.mxu0 %v339
    %608 = vmatpush.msra.mxu0 %v336
    %609 = vmatpush.msra.mxu0 %v333
    %610 = vmatpush.msra.mxu0 %v330
    %611 = vmatpush.msra.mxu0 %v327
    %612 = vmatpush.msra.mxu0 %v324
    %613 = vmatpush.msra.mxu0 %v321
    %614 = vmatpush.msra.mxu0 %v318
    %615 = vmatmul.f32.gmra.mxu0 %v597
    %v616 = vpop.f32.mrf.mxu0
    %v617 = vadd.f32 0.0, %v616
    %618 = vdwg.mxu0
    %619 = vmatpush.msra.mxu0 %v364
    %620 = vmatpush.msra.mxu0 %v361
    %621 = vmatpush.msra.mxu0 %v358
    %622 = vmatpush.msra.mxu0 %v355
    %623 = vmatpush.msra.mxu0 %v352
    %624 = vmatpush.msra.mxu0 %v349
    %625 = vmatpush.msra.mxu0 %v346
    %626 = vmatpush.msra.mxu0 %v343
    %627 = vmatpush.msra.mxu0 %v340
    %628 = vmatpush.msra.mxu0 %v337
    %629 = vmatpush.msra.mxu0 %v334
    %630 = vmatpush.msra.mxu0 %v331
    %631 = vmatpush.msra.mxu0 %v328
    %632 = vmatpush.msra.mxu0 %v325
    %633 = vmatpush.msra.mxu0 %v322
    %634 = vmatpush.msra.mxu0 %v319
    %635 = vmatmul.f32.gmra.mxu0 %v597
    %v636 = vpop.f32.mrf.mxu0
    %v637 = vadd.f32 0.0, %v636
    %638 = vdwg.mxu0
    %639 = vmatpush.msra.mxu0 %v365
    %640 = vmatpush.msra.mxu0 %v362
    %641 = vmatpush.msra.mxu0 %v359
    %642 = vmatpush.msra.mxu0 %v356
    %643 = vmatpush.msra.mxu0 %v353
    %644 = vmatpush.msra.mxu0 %v350
    %645 = vmatpush.msra.mxu0 %v347
    %646 = vmatpush.msra.mxu0 %v344
    %647 = vmatpush.msra.mxu0 %v341
    %648 = vmatpush.msra.mxu0 %v338
    %649 = vmatpush.msra.mxu0 %v335
    %650 = vmatpush.msra.mxu0 %v332
    %651 = vmatpush.msra.mxu0 %v329
    %652 = vmatpush.msra.mxu0 %v326
    %653 = vmatpush.msra.mxu0 %v323
    %654 = vmatpush.msra.mxu0 %v320
    %655 = vmatmul.f32.gmra.mxu0 %v597
    %v656 = vpop.f32.mrf.mxu0
    %v657 = vadd.f32 0.0, %v656
    %658 = vdwg.mxu0
    %v660 = vrot.slane %v617, 6
    %v662 = vadd.f32 %v315, %v660
    %v663 = vxor.u32 %v662, 2147483648
    %v664 = vmul.f32 %v663, 1.442695
    %v665 = vpow.pop %v664
    %v666 = vadd.f32 %v665, 1.0
    %v667 = vrcp.pop %v666
    %v668 = vmul.f32 %v666, %v667
    %v669 = vsub.f32 1.0, %v668
    %v670 = vmul.f32 %v667, %v669
    %v671 = vadd.f32 %v667, %v670
    %vm672 = vweird.f32 %v666
    %vm673 = vweird.f32 %v667
    %vm674 = vmor %vm672, %vm673
    %v675 = vsel %vm674, %v667, %v671
    %v676 = vand.u32 2147483647, %v666
    %vm677 = vcmp.eq.f32.partialorder %v676, 8.507059e+37
    %v678 = vand.u32 %v666, 2147483648
    %v679 = vor.u32 1.1754944e-38, %v678
    %v680 = vsel %vm677, %v679, %v675
    %v681 = vmul.f32 1.0, %v680
    %v683 = vrot.slane %v637, 6
    %v685 = vadd.f32 %v316, %v683
    %v686 = vxor.u32 %v685, 2147483648
    %v687 = vmul.f32 %v686, 1.442695
    %v688 = vpow.pop %v687
    %v689 = vadd.f32 %v688, 1.0
    %v690 = vrcp.pop %v689
    %v691 = vmul.f32 %v689, %v690
    %v692 = vsub.f32 1.0, %v691
    %v693 = vmul.f32 %v690, %v692
    %v694 = vadd.f32 %v690, %v693
    %vm695 = vweird.f32 %v689
    %vm696 = vweird.f32 %v690
    %vm697 = vmor %vm695, %vm696
    %v698 = vsel %vm697, %v690, %v694
    %v699 = vand.u32 2147483647, %v689
    %vm700 = vcmp.eq.f32.partialorder %v699, 8.507059e+37
    %v701 = vand.u32 %v689, 2147483648
    %v702 = vor.u32 1.1754944e-38, %v701
    %v703 = vsel %vm700, %v702, %v698
    %v704 = vmul.f32 1.0, %v703
    %v705 = vadd.f32 %v657, %v366
    %v707 = vrot.slane %v705, 6
    %v709 = vmul.f32 %v681, %v707
    %v710 = vadd.f32 %v317, %v709
    %v711 = vtanh.pop %v710
    %v712 = vsub.f32 1.0, %v704
    %v713 = vmul.f32 %v712, %v711
    %v714 = vrot.slane %v595, 7
    %v716 = vmul.f32 %v704, %v714
    %v717 = vadd.f32 %v713, %v716
    %v719 = vrot.slane %v717, 2
    %721 = vmatpush.msra.mxu0 %v363
    %722 = vmatpush.msra.mxu0 %v360
    %723 = vmatpush.msra.mxu0 %v357
    %724 = vmatpush.msra.mxu0 %v354
    %725 = vmatpush.msra.mxu0 %v351
    %726 = vmatpush.msra.mxu0 %v348
    %727 = vmatpush.msra.mxu0 %v345
    %728 = vmatpush.msra.mxu0 %v342
    %729 = vmatpush.msra.mxu0 %v339
    %730 = vmatpush.msra.mxu0 %v336
    %731 = vmatpush.msra.mxu0 %v333
    %732 = vmatpush.msra.mxu0 %v330
    %733 = vmatpush.msra.mxu0 %v327
    %734 = vmatpush.msra.mxu0 %v324
    %735 = vmatpush.msra.mxu0 %v321
    %736 = vmatpush.msra.mxu0 %v318
    %737 = vmatmul.f32.gmra.mxu0 %v719
    %v738 = vpop.f32.mrf.mxu0
    %v739 = vadd.f32 0.0, %v738
    %740 = vdwg.mxu0
    %741 = vmatpush.msra.mxu0 %v364
    %742 = vmatpush.msra.mxu0 %v361
    %743 = vmatpush.msra.mxu0 %v358
    %744 = vmatpush.msra.mxu0 %v355
    %745 = vmatpush.msra.mxu0 %v352
    %746 = vmatpush.msra.mxu0 %v349
    %747 = vmatpush.msra.mxu0 %v346
    %748 = vmatpush.msra.mxu0 %v343
    %749 = vmatpush.msra.mxu0 %v340
    %750 = vmatpush.msra.mxu0 %v337
    %751 = vmatpush.msra.mxu0 %v334
    %752 = vmatpush.msra.mxu0 %v331
    %753 = vmatpush.msra.mxu0 %v328
    %754 = vmatpush.msra.mxu0 %v325
    %755 = vmatpush.msra.mxu0 %v322
    %756 = vmatpush.msra.mxu0 %v319
    %757 = vmatmul.f32.gmra.mxu0 %v719
    %v758 = vpop.f32.mrf.mxu0
    %v759 = vadd.f32 0.0, %v758
    %760 = vdwg.mxu0
    %761 = vmatpush.msra.mxu0 %v365
    %762 = vmatpush.msra.mxu0 %v362
    %763 = vmatpush.msra.mxu0 %v359
    %764 = vmatpush.msra.mxu0 %v356
    %765 = vmatpush.msra.mxu0 %v353
    %766 = vmatpush.msra.mxu0 %v350
    %767 = vmatpush.msra.mxu0 %v347
    %768 = vmatpush.msra.mxu0 %v344
    %769 = vmatpush.msra.mxu0 %v341
    %770 = vmatpush.msra.mxu0 %v338
    %771 = vmatpush.msra.mxu0 %v335
    %772 = vmatpush.msra.mxu0 %v332
    %773 = vmatpush.msra.mxu0 %v329
    %774 = vmatpush.msra.mxu0 %v326
    %775 = vmatpush.msra.mxu0 %v323
    %776 = vmatpush.msra.mxu0 %v320
    %777 = vmatmul.f32.gmra.mxu0 %v719
    %v778 = vpop.f32.mrf.mxu0
    %v779 = vadd.f32 0.0, %v778
    %780 = vdwg.mxu0
    %v782 = vrot.slane %v739, 5
    %v784 = vadd.f32 %v315, %v782
    %v785 = vxor.u32 %v784, 2147483648
    %v786 = vmul.f32 %v785, 1.442695
    %v787 = vpow.pop %v786
    %v788 = vadd.f32 %v787, 1.0
    %v789 = vrcp.pop %v788
    %v790 = vmul.f32 %v788, %v789
    %v791 = vsub.f32 1.0, %v790
    %v792 = vmul.f32 %v789, %v791
    %v793 = vadd.f32 %v789, %v792
    %vm794 = vweird.f32 %v788
    %vm795 = vweird.f32 %v789
    %vm796 = vmor %vm794, %vm795
    %v797 = vsel %vm796, %v789, %v793
    %v798 = vand.u32 2147483647, %v788
    %vm799 = vcmp.eq.f32.partialorder %v798, 8.507059e+37
    %v800 = vand.u32 %v788, 2147483648
    %v801 = vor.u32 1.1754944e-38, %v800
    %v802 = vsel %vm799, %v801, %v797
    %v803 = vmul.f32 1.0, %v802
    %v805 = vrot.slane %v759, 5
    %v807 = vadd.f32 %v316, %v805
    %v808 = vxor.u32 %v807, 2147483648
    %v809 = vmul.f32 %v808, 1.442695
    %v810 = vpow.pop %v809
    %v811 = vadd.f32 %v810, 1.0
    %v812 = vrcp.pop %v811
    %v813 = vmul.f32 %v811, %v812
    %v814 = vsub.f32 1.0, %v813
    %v815 = vmul.f32 %v812, %v814
    %v816 = vadd.f32 %v812, %v815
    %vm817 = vweird.f32 %v811
    %vm818 = vweird.f32 %v812
    %vm819 = vmor %vm817, %vm818
    %v820 = vsel %vm819, %v812, %v816
    %v821 = vand.u32 2147483647, %v811
    %vm822 = vcmp.eq.f32.partialorder %v821, 8.507059e+37
    %v823 = vand.u32 %v811, 2147483648
    %v824 = vor.u32 1.1754944e-38, %v823
    %v825 = vsel %vm822, %v824, %v820
    %v826 = vmul.f32 1.0, %v825
    %v827 = vadd.f32 %v779, %v366
    %v829 = vrot.slane %v827, 5
    %v831 = vmul.f32 %v803, %v829
    %v832 = vadd.f32 %v317, %v831
    %v833 = vtanh.pop %v832
    %v834 = vsub.f32 1.0, %v826
    %v835 = vmul.f32 %v834, %v833
    %v836 = vrot.slane %v717, 7
    %v838 = vmul.f32 %v826, %v836
    %v839 = vadd.f32 %v835, %v838
    %v841 = vrot.slane %v839, 3
    %843 = vmatpush.msra.mxu0 %v363
    %844 = vmatpush.msra.mxu0 %v360
    %845 = vmatpush.msra.mxu0 %v357
    %846 = vmatpush.msra.mxu0 %v354
    %847 = vmatpush.msra.mxu0 %v351
    %848 = vmatpush.msra.mxu0 %v348
    %849 = vmatpush.msra.mxu0 %v345
    %850 = vmatpush.msra.mxu0 %v342
    %851 = vmatpush.msra.mxu0 %v339
    %852 = vmatpush.msra.mxu0 %v336
    %853 = vmatpush.msra.mxu0 %v333
    %854 = vmatpush.msra.mxu0 %v330
    %855 = vmatpush.msra.mxu0 %v327
    %856 = vmatpush.msra.mxu0 %v324
    %857 = vmatpush.msra.mxu0 %v321
    %858 = vmatpush.msra.mxu0 %v318
    %859 = vmatmul.f32.gmra.mxu0 %v841
    %v860 = vpop.f32.mrf.mxu0
    %v861 = vadd.f32 0.0, %v860
    %862 = vdwg.mxu0
    %863 = vmatpush.msra.mxu0 %v364
    %864 = vmatpush.msra.mxu0 %v361
    %865 = vmatpush.msra.mxu0 %v358
    %866 = vmatpush.msra.mxu0 %v355
    %867 = vmatpush.msra.mxu0 %v352
    %868 = vmatpush.msra.mxu0 %v349
    %869 = vmatpush.msra.mxu0 %v346
    %870 = vmatpush.msra.mxu0 %v343
    %871 = vmatpush.msra.mxu0 %v340
    %872 = vmatpush.msra.mxu0 %v337
    %873 = vmatpush.msra.mxu0 %v334
    %874 = vmatpush.msra.mxu0 %v331
    %875 = vmatpush.msra.mxu0 %v328
    %876 = vmatpush.msra.mxu0 %v325
    %877 = vmatpush.msra.mxu0 %v322
    %878 = vmatpush.msra.mxu0 %v319
    %879 = vmatmul.f32.gmra.mxu0 %v841
    %v880 = vpop.f32.mrf.mxu0
    %v881 = vadd.f32 0.0, %v880
    %882 = vdwg.mxu0
    %883 = vmatpush.msra.mxu0 %v365
    %884 = vmatpush.msra.mxu0 %v362
    %885 = vmatpush.msra.mxu0 %v359
    %886 = vmatpush.msra.mxu0 %v356
    %887 = vmatpush.msra.mxu0 %v353
    %888 = vmatpush.msra.mxu0 %v350
    %889 = vmatpush.msra.mxu0 %v347
    %890 = vmatpush.msra.mxu0 %v344
    %891 = vmatpush.msra.mxu0 %v341
    %892 = vmatpush.msra.mxu0 %v338
    %893 = vmatpush.msra.mxu0 %v335
    %894 = vmatpush.msra.mxu0 %v332
    %895 = vmatpush.msra.mxu0 %v329
    %896 = vmatpush.msra.mxu0 %v326
    %897 = vmatpush.msra.mxu0 %v323
    %898 = vmatpush.msra.mxu0 %v320
    %899 = vmatmul.f32.gmra.mxu0 %v841
    %v900 = vpop.f32.mrf.mxu0
    %v901 = vadd.f32 0.0, %v900
    %902 = vdwg.mxu0
    %v904 = vrot.slane %v861, 4
    %v906 = vadd.f32 %v315, %v904
    %v907 = vxor.u32 %v906, 2147483648
    %v908 = vmul.f32 %v907, 1.442695
    %v909 = vpow.pop %v908
    %v910 = vadd.f32 %v909, 1.0
    %v911 = vrcp.pop %v910
    %v912 = vmul.f32 %v910, %v911
    %v913 = vsub.f32 1.0, %v912
    %v914 = vmul.f32 %v911, %v913
    %v915 = vadd.f32 %v911, %v914
    %vm916 = vweird.f32 %v910
    %vm917 = vweird.f32 %v911
    %vm918 = vmor %vm916, %vm917
    %v919 = vsel %vm918, %v911, %v915
    %v920 = vand.u32 2147483647, %v910
    %vm921 = vcmp.eq.f32.partialorder %v920, 8.507059e+37
    %v922 = vand.u32 %v910, 2147483648
    %v923 = vor.u32 1.1754944e-38, %v922
    %v924 = vsel %vm921, %v923, %v919
    %v925 = vmul.f32 1.0, %v924
    %v927 = vrot.slane %v881, 4
    %v929 = vadd.f32 %v316, %v927
    %v930 = vxor.u32 %v929, 2147483648
    %v931 = vmul.f32 %v930, 1.442695
    %v932 = vpow.pop %v931
    %v933 = vadd.f32 %v932, 1.0
    %v934 = vrcp.pop %v933
    %v935 = vmul.f32 %v933, %v934
    %v936 = vsub.f32 1.0, %v935
    %v937 = vmul.f32 %v934, %v936
    %v938 = vadd.f32 %v934, %v937
    %vm939 = vweird.f32 %v933
    %vm940 = vweird.f32 %v934
    %vm941 = vmor %vm939, %vm940
    %v942 = vsel %vm941, %v934, %v938
    %v943 = vand.u32 2147483647, %v933
    %vm944 = vcmp.eq.f32.partialorder %v943, 8.507059e+37
    %v945 = vand.u32 %v933, 2147483648
    %v946 = vor.u32 1.1754944e-38, %v945
    %v947 = vsel %vm944, %v946, %v942
    %v948 = vmul.f32 1.0, %v947
    %v949 = vadd.f32 %v901, %v366
    %v951 = vrot.slane %v949, 4
    %v953 = vmul.f32 %v925, %v951
    %v954 = vadd.f32 %v317, %v953
    %v955 = vtanh.pop %v954
    %v956 = vsub.f32 1.0, %v948
    %v957 = vmul.f32 %v956, %v955
    %v958 = vrot.slane %v839, 7
    %v960 = vmul.f32 %v948, %v958
    %v961 = vadd.f32 %v957, %v960
    %v963 = vrot.slane %v961, 4
    %965 = vmatpush.msra.mxu0 %v363
    %966 = vmatpush.msra.mxu0 %v360
    %967 = vmatpush.msra.mxu0 %v357
    %968 = vmatpush.msra.mxu0 %v354
    %969 = vmatpush.msra.mxu0 %v351
    %970 = vmatpush.msra.mxu0 %v348
    %971 = vmatpush.msra.mxu0 %v345
    %972 = vmatpush.msra.mxu0 %v342
    %973 = vmatpush.msra.mxu0 %v339
    %974 = vmatpush.msra.mxu0 %v336
    %975 = vmatpush.msra.mxu0 %v333
    %976 = vmatpush.msra.mxu0 %v330
    %977 = vmatpush.msra.mxu0 %v327
    %978 = vmatpush.msra.mxu0 %v324
    %979 = vmatpush.msra.mxu0 %v321
    %980 = vmatpush.msra.mxu0 %v318
    %981 = vmatmul.f32.gmra.mxu0 %v963
    %v982 = vpop.f32.mrf.mxu0
    %v983 = vadd.f32 0.0, %v982
    %984 = vdwg.mxu0
    %985 = vmatpush.msra.mxu0 %v364
    %986 = vmatpush.msra.mxu0 %v361
    %987 = vmatpush.msra.mxu0 %v358
    %988 = vmatpush.msra.mxu0 %v355
    %989 = vmatpush.msra.mxu0 %v352
    %990 = vmatpush.msra.mxu0 %v349
    %991 = vmatpush.msra.mxu0 %v346
    %992 = vmatpush.msra.mxu0 %v343
    %993 = vmatpush.msra.mxu0 %v340
    %994 = vmatpush.msra.mxu0 %v337
    %995 = vmatpush.msra.mxu0 %v334
    %996 = vmatpush.msra.mxu0 %v331
    %997 = vmatpush.msra.mxu0 %v328
    %998 = vmatpush.msra.mxu0 %v325
    %999 = vmatpush.msra.mxu0 %v322
    %1000 = vmatpush.msra.mxu0 %v319
    %1001 = vmatmul.f32.gmra.mxu0 %v963
    %v1002 = vpop.f32.mrf.mxu0
    %v1003 = vadd.f32 0.0, %v1002
    %1004 = vdwg.mxu0
    %1005 = vmatpush.msra.mxu0 %v365
    %1006 = vmatpush.msra.mxu0 %v362
    %1007 = vmatpush.msra.mxu0 %v359
    %1008 = vmatpush.msra.mxu0 %v356
    %1009 = vmatpush.msra.mxu0 %v353
    %1010 = vmatpush.msra.mxu0 %v350
    %1011 = vmatpush.msra.mxu0 %v347
    %1012 = vmatpush.msra.mxu0 %v344
    %1013 = vmatpush.msra.mxu0 %v341
    %1014 = vmatpush.msra.mxu0 %v338
    %1015 = vmatpush.msra.mxu0 %v335
    %1016 = vmatpush.msra.mxu0 %v332
    %1017 = vmatpush.msra.mxu0 %v329
    %1018 = vmatpush.msra.mxu0 %v326
    %1019 = vmatpush.msra.mxu0 %v323
    %1020 = vmatpush.msra.mxu0 %v320
    %1021 = vmatmul.f32.gmra.mxu0 %v963
    %v1022 = vpop.f32.mrf.mxu0
    %v1023 = vadd.f32 0.0, %v1022
    %1024 = vdwg.mxu0
    %v1026 = vrot.slane %v983, 3
    %v1028 = vadd.f32 %v315, %v1026
    %v1029 = vxor.u32 %v1028, 2147483648
    %v1030 = vmul.f32 %v1029, 1.442695
    %v1031 = vpow.pop %v1030
    %v1032 = vadd.f32 %v1031, 1.0
    %v1033 = vrcp.pop %v1032
    %v1034 = vmul.f32 %v1032, %v1033
    %v1035 = vsub.f32 1.0, %v1034
    %v1036 = vmul.f32 %v1033, %v1035
    %v1037 = vadd.f32 %v1033, %v1036
    %vm1038 = vweird.f32 %v1032
    %vm1039 = vweird.f32 %v1033
    %vm1040 = vmor %vm1038, %vm1039
    %v1041 = vsel %vm1040, %v1033, %v1037
    %v1042 = vand.u32 2147483647, %v1032
    %vm1043 = vcmp.eq.f32.partialorder %v1042, 8.507059e+37
    %v1044 = vand.u32 %v1032, 2147483648
    %v1045 = vor.u32 1.1754944e-38, %v1044
    %v1046 = vsel %vm1043, %v1045, %v1041
    %v1047 = vmul.f32 1.0, %v1046
    %v1049 = vrot.slane %v1003, 3
    %v1051 = vadd.f32 %v316, %v1049
    %v1052 = vxor.u32 %v1051, 2147483648
    %v1053 = vmul.f32 %v1052, 1.442695
    %v1054 = vpow.pop %v1053
    %v1055 = vadd.f32 %v1054, 1.0
    %v1056 = vrcp.pop %v1055
    %v1057 = vmul.f32 %v1055, %v1056
    %v1058 = vsub.f32 1.0, %v1057
    %v1059 = vmul.f32 %v1056, %v1058
    %v1060 = vadd.f32 %v1056, %v1059
    %vm1061 = vweird.f32 %v1055
    %vm1062 = vweird.f32 %v1056
    %vm1063 = vmor %vm1061, %vm1062
    %v1064 = vsel %vm1063, %v1056, %v1060
    %v1065 = vand.u32 2147483647, %v1055
    %vm1066 = vcmp.eq.f32.partialorder %v1065, 8.507059e+37
    %v1067 = vand.u32 %v1055, 2147483648
    %v1068 = vor.u32 1.1754944e-38, %v1067
    %v1069 = vsel %vm1066, %v1068, %v1064
    %v1070 = vmul.f32 1.0, %v1069
    %v1071 = vadd.f32 %v1023, %v366
    %v1073 = vrot.slane %v1071, 3
    %v1075 = vmul.f32 %v1047, %v1073
    %v1076 = vadd.f32 %v317, %v1075
    %v1077 = vtanh.pop %v1076
    %v1078 = vsub.f32 1.0, %v1070
    %v1079 = vmul.f32 %v1078, %v1077
    %v1080 = vrot.slane %v961, 7
    %v1082 = vmul.f32 %v1070, %v1080
    %v1083 = vadd.f32 %v1079, %v1082
    %v1085 = vrot.slane %v1083, 5
    %1087 = vmatpush.msra.mxu0 %v363
    %1088 = vmatpush.msra.mxu0 %v360
    %1089 = vmatpush.msra.mxu0 %v357
    %1090 = vmatpush.msra.mxu0 %v354
    %1091 = vmatpush.msra.mxu0 %v351
    %1092 = vmatpush.msra.mxu0 %v348
    %1093 = vmatpush.msra.mxu0 %v345
    %1094 = vmatpush.msra.mxu0 %v342
    %1095 = vmatpush.msra.mxu0 %v339
    %1096 = vmatpush.msra.mxu0 %v336
    %1097 = vmatpush.msra.mxu0 %v333
    %1098 = vmatpush.msra.mxu0 %v330
    %1099 = vmatpush.msra.mxu0 %v327
    %1100 = vmatpush.msra.mxu0 %v324
    %1101 = vmatpush.msra.mxu0 %v321
    %1102 = vmatpush.msra.mxu0 %v318
    %1103 = vmatmul.f32.gmra.mxu0 %v1085
    %v1104 = vpop.f32.mrf.mxu0
    %v1105 = vadd.f32 0.0, %v1104
    %1106 = vdwg.mxu0
    %1107 = vmatpush.msra.mxu0 %v364
    %1108 = vmatpush.msra.mxu0 %v361
    %1109 = vmatpush.msra.mxu0 %v358
    %1110 = vmatpush.msra.mxu0 %v355
    %1111 = vmatpush.msra.mxu0 %v352
    %1112 = vmatpush.msra.mxu0 %v349
    %1113 = vmatpush.msra.mxu0 %v346
    %1114 = vmatpush.msra.mxu0 %v343
    %1115 = vmatpush.msra.mxu0 %v340
    %1116 = vmatpush.msra.mxu0 %v337
    %1117 = vmatpush.msra.mxu0 %v334
    %1118 = vmatpush.msra.mxu0 %v331
    %1119 = vmatpush.msra.mxu0 %v328
    %1120 = vmatpush.msra.mxu0 %v325
    %1121 = vmatpush.msra.mxu0 %v322
    %1122 = vmatpush.msra.mxu0 %v319
    %1123 = vmatmul.f32.gmra.mxu0 %v1085
    %v1124 = vpop.f32.mrf.mxu0
    %v1125 = vadd.f32 0.0, %v1124
    %1126 = vdwg.mxu0
    %1127 = vmatpush.msra.mxu0 %v365
    %1128 = vmatpush.msra.mxu0 %v362
    %1129 = vmatpush.msra.mxu0 %v359
    %1130 = vmatpush.msra.mxu0 %v356
    %1131 = vmatpush.msra.mxu0 %v353
    %1132 = vmatpush.msra.mxu0 %v350
    %1133 = vmatpush.msra.mxu0 %v347
    %1134 = vmatpush.msra.mxu0 %v344
    %1135 = vmatpush.msra.mxu0 %v341
    %1136 = vmatpush.msra.mxu0 %v338
    %1137 = vmatpush.msra.mxu0 %v335
    %1138 = vmatpush.msra.mxu0 %v332
    %1139 = vmatpush.msra.mxu0 %v329
    %1140 = vmatpush.msra.mxu0 %v326
    %1141 = vmatpush.msra.mxu0 %v323
    %1142 = vmatpush.msra.mxu0 %v320
    %1143 = vmatmul.f32.gmra.mxu0 %v1085
    %v1144 = vpop.f32.mrf.mxu0
    %v1145 = vadd.f32 0.0, %v1144
    %1146 = vdwg.mxu0
    %v1148 = vrot.slane %v1105, 2
    %v1150 = vadd.f32 %v315, %v1148
    %v1151 = vxor.u32 %v1150, 2147483648
    %v1152 = vmul.f32 %v1151, 1.442695
    %v1153 = vpow.pop %v1152
    %v1154 = vadd.f32 %v1153, 1.0
    %v1155 = vrcp.pop %v1154
    %v1156 = vmul.f32 %v1154, %v1155
    %v1157 = vsub.f32 1.0, %v1156
    %v1158 = vmul.f32 %v1155, %v1157
    %v1159 = vadd.f32 %v1155, %v1158
    %vm1160 = vweird.f32 %v1154
    %vm1161 = vweird.f32 %v1155
    %vm1162 = vmor %vm1160, %vm1161
    %v1163 = vsel %vm1162, %v1155, %v1159
    %v1164 = vand.u32 2147483647, %v1154
    %vm1165 = vcmp.eq.f32.partialorder %v1164, 8.507059e+37
    %v1166 = vand.u32 %v1154, 2147483648
    %v1167 = vor.u32 1.1754944e-38, %v1166
    %v1168 = vsel %vm1165, %v1167, %v1163
    %v1169 = vmul.f32 1.0, %v1168
    %v1171 = vrot.slane %v1125, 2
    %v1173 = vadd.f32 %v316, %v1171
    %v1174 = vxor.u32 %v1173, 2147483648
    %v1175 = vmul.f32 %v1174, 1.442695
    %v1176 = vpow.pop %v1175
    %v1177 = vadd.f32 %v1176, 1.0
    %v1178 = vrcp.pop %v1177
    %v1179 = vmul.f32 %v1177, %v1178
    %v1180 = vsub.f32 1.0, %v1179
    %v1181 = vmul.f32 %v1178, %v1180
    %v1182 = vadd.f32 %v1178, %v1181
    %vm1183 = vweird.f32 %v1177
    %vm1184 = vweird.f32 %v1178
    %vm1185 = vmor %vm1183, %vm1184
    %v1186 = vsel %vm1185, %v1178, %v1182
    %v1187 = vand.u32 2147483647, %v1177
    %vm1188 = vcmp.eq.f32.partialorder %v1187, 8.507059e+37
    %v1189 = vand.u32 %v1177, 2147483648
    %v1190 = vor.u32 1.1754944e-38, %v1189
    %v1191 = vsel %vm1188, %v1190, %v1186
    %v1192 = vmul.f32 1.0, %v1191
    %v1193 = vadd.f32 %v1145, %v366
    %v1195 = vrot.slane %v1193, 2
    %v1197 = vmul.f32 %v1169, %v1195
    %v1198 = vadd.f32 %v317, %v1197
    %v1199 = vtanh.pop %v1198
    %v1200 = vsub.f32 1.0, %v1192
    %v1201 = vmul.f32 %v1200, %v1199
    %v1202 = vrot.slane %v1083, 7
    %v1204 = vmul.f32 %v1192, %v1202
    %v1205 = vadd.f32 %v1201, %v1204
    %v1207 = vrot.slane %v1205, 6
    %1209 = vmatpush.msra.mxu0 %v363
    %1210 = vmatpush.msra.mxu0 %v360
    %1211 = vmatpush.msra.mxu0 %v357
    %1212 = vmatpush.msra.mxu0 %v354
    %1213 = vmatpush.msra.mxu0 %v351
    %1214 = vmatpush.msra.mxu0 %v348
    %1215 = vmatpush.msra.mxu0 %v345
    %1216 = vmatpush.msra.mxu0 %v342
    %1217 = vmatpush.msra.mxu0 %v339
    %1218 = vmatpush.msra.mxu0 %v336
    %1219 = vmatpush.msra.mxu0 %v333
    %1220 = vmatpush.msra.mxu0 %v330
    %1221 = vmatpush.msra.mxu0 %v327
    %1222 = vmatpush.msra.mxu0 %v324
    %1223 = vmatpush.msra.mxu0 %v321
    %1224 = vmatpush.msra.mxu0 %v318
    %1225 = vmatmul.f32.gmra.mxu0 %v1207
    %v1226 = vpop.f32.mrf.mxu0
    %v1227 = vadd.f32 0.0, %v1226
    %1228 = vdwg.mxu0
    %1229 = vmatpush.msra.mxu0 %v364
    %1230 = vmatpush.msra.mxu0 %v361
    %1231 = vmatpush.msra.mxu0 %v358
    %1232 = vmatpush.msra.mxu0 %v355
    %1233 = vmatpush.msra.mxu0 %v352
    %1234 = vmatpush.msra.mxu0 %v349
    %1235 = vmatpush.msra.mxu0 %v346
    %1236 = vmatpush.msra.mxu0 %v343
    %1237 = vmatpush.msra.mxu0 %v340
    %1238 = vmatpush.msra.mxu0 %v337
    %1239 = vmatpush.msra.mxu0 %v334
    %1240 = vmatpush.msra.mxu0 %v331
    %1241 = vmatpush.msra.mxu0 %v328
    %1242 = vmatpush.msra.mxu0 %v325
    %1243 = vmatpush.msra.mxu0 %v322
    %1244 = vmatpush.msra.mxu0 %v319
    %1245 = vmatmul.f32.gmra.mxu0 %v1207
    %v1246 = vpop.f32.mrf.mxu0
    %v1247 = vadd.f32 0.0, %v1246
    %1248 = vdwg.mxu0
    %1249 = vmatpush.msra.mxu0 %v365
    %1250 = vmatpush.msra.mxu0 %v362
    %1251 = vmatpush.msra.mxu0 %v359
    %1252 = vmatpush.msra.mxu0 %v356
    %1253 = vmatpush.msra.mxu0 %v353
    %1254 = vmatpush.msra.mxu0 %v350
    %1255 = vmatpush.msra.mxu0 %v347
    %1256 = vmatpush.msra.mxu0 %v344
    %1257 = vmatpush.msra.mxu0 %v341
    %1258 = vmatpush.msra.mxu0 %v338
    %1259 = vmatpush.msra.mxu0 %v335
    %1260 = vmatpush.msra.mxu0 %v332
    %1261 = vmatpush.msra.mxu0 %v329
    %1262 = vmatpush.msra.mxu0 %v326
    %1263 = vmatpush.msra.mxu0 %v323
    %1264 = vmatpush.msra.mxu0 %v320
    %1265 = vmatmul.f32.gmra.mxu0 %v1207
    %v1266 = vpop.f32.mrf.mxu0
    %v1267 = vadd.f32 0.0, %v1266
    %1268 = vdwg.mxu0
    %v1270 = vrot.slane %v1227, 1
    %v1272 = vadd.f32 %v315, %v1270
    %v1273 = vxor.u32 %v1272, 2147483648
    %v1274 = vmul.f32 %v1273, 1.442695
    %v1275 = vpow.pop %v1274
    %v1276 = vadd.f32 %v1275, 1.0
    %v1277 = vrcp.pop %v1276
    %v1278 = vmul.f32 %v1276, %v1277
    %v1279 = vsub.f32 1.0, %v1278
    %v1280 = vmul.f32 %v1277, %v1279
    %v1281 = vadd.f32 %v1277, %v1280
    %vm1282 = vweird.f32 %v1276
    %vm1283 = vweird.f32 %v1277
    %vm1284 = vmor %vm1282, %vm1283
    %v1285 = vsel %vm1284, %v1277, %v1281
    %v1286 = vand.u32 2147483647, %v1276
    %vm1287 = vcmp.eq.f32.partialorder %v1286, 8.507059e+37
    %v1288 = vand.u32 %v1276, 2147483648
    %v1289 = vor.u32 1.1754944e-38, %v1288
    %v1290 = vsel %vm1287, %v1289, %v1285
    %v1291 = vmul.f32 1.0, %v1290
    %v1293 = vrot.slane %v1247, 1
    %v1295 = vadd.f32 %v316, %v1293
    %v1296 = vxor.u32 %v1295, 2147483648
    %v1297 = vmul.f32 %v1296, 1.442695
    %v1298 = vpow.pop %v1297
    %v1299 = vadd.f32 %v1298, 1.0
    %v1300 = vrcp.pop %v1299
    %v1301 = vmul.f32 %v1299, %v1300
    %v1302 = vsub.f32 1.0, %v1301
    %v1303 = vmul.f32 %v1300, %v1302
    %v1304 = vadd.f32 %v1300, %v1303
    %vm1305 = vweird.f32 %v1299
    %vm1306 = vweird.f32 %v1300
    %vm1307 = vmor %vm1305, %vm1306
    %v1308 = vsel %vm1307, %v1300, %v1304
    %v1309 = vand.u32 2147483647, %v1299
    %vm1310 = vcmp.eq.f32.partialorder %v1309, 8.507059e+37
    %v1311 = vand.u32 %v1299, 2147483648
    %v1312 = vor.u32 1.1754944e-38, %v1311
    %v1313 = vsel %vm1310, %v1312, %v1308
    %v1314 = vmul.f32 1.0, %v1313
    %v1315 = vadd.f32 %v1267, %v366
    %v1317 = vrot.slane %v1315, 1
    %v1319 = vmul.f32 %v1291, %v1317
    %v1320 = vadd.f32 %v317, %v1319
    %v1321 = vtanh.pop %v1320
    %v1322 = vsub.f32 1.0, %v1314
    %v1323 = vmul.f32 %v1322, %v1321
    %v1324 = vrot.slane %v1205, 7
    %v1326 = vmul.f32 %v1314, %v1324
    %v1327 = vadd.f32 %v1323, %v1326
    %v1328 = vlaneseq
    %v1329 = vand.u32 %v1328, 127
    %vm1330 = vcmp.lt.s32.totalorder %v1329, 16
    %v1332 = vrot.slane %v1327, 7
    %v1334 = vsel %vm1330, %v475, %v1332
    %v1335 = vrot.slane %v1205, 5
    %v1337 = vsel %vm1330, %v595, %v1335
    %v1338 = vrot.slane %v1083, 3
    %v1340 = vsel %vm1330, %v717, %v1338
    %v1341 = vrot.slane %v961, 1
    %v1343 = vsel %vm1330, %v839, %v1341
    %v1344 = vsel %vm1330, %v961, %v958
    %v1345 = vrot.slane %v717, 5
    %v1347 = vsel %vm1330, %v1083, %v1345
    %v1348 = vrot.slane %v595, 3
    %v1350 = vsel %vm1330, %v1205, %v1348
    %v1351 = vrot.slane %v475, 1
    %v1353 = vsel %vm1330, %v1327, %v1351
    %v1354 = vsel %vm132, %v1334, %v1337
    %v1355 = vsel %vm134, %v1354, %v1340
    %v1356 = vsel %vm136, %v1355, %v1343
    %v1357 = vsel %vm138, %v1356, %v1344
    %v1358 = vsel %vm140, %v1357, %v1347
    %v1359 = vsel %vm142, %v1358, %v1350
    %v1360 = vsel %vm144, %v1359, %v1353
    %1361 = vst [vmem:[%s8] sm:$0xff] %v1360
    // Predicated region
    $region50: #{bigru_encoder.1} parent=1 // pred_check
      _
    $region51: #{bigru_encoder.1} parent=1 // pred_check_branch
      %1363 = sbr.rel (0) target = $region53
    $region52: #{bigru_encoder.1} parent=1 // pred_region
      _
    $region53: #{bigru_encoder.1} parent=1 // pred_fallthru
      _
    // Predicated region
    $region54: #{bigru_encoder.1} parent=1 // pred_check
      _
    $region55: #{bigru_encoder.1} parent=1 // pred_check_branch
      %1365 = sbr.rel (0) target = $region57
    $region56: #{bigru_encoder.1} parent=1 // pred_region
      _
    $region57: #{bigru_encoder.1} parent=1 // pred_fallthru
      _
    %1366 = vsyncpa [#allocation3], 1
    %1367 = vsyncpa [#allocation7], 1
    %1368 = vsyncpa [#allocation4], 1

</llo_original>
